<compile_context>
chip_gen: v5e
topology: v5e:2x2
jax: 0.10.0
libtpu: 0.0.40
codegen_flags: <defaults>
</compile_context>

<pallas_src>
import jax
import jax.numpy as jnp
from jax import lax
from jax.experimental import pallas as pl
from jax.experimental.pallas import tpu as pltpu


def _round_up(x, m):
    return ((x + m - 1) // m) * m


def gru_fc_kernel(x_ref, h0_ref, wih_ref, whh_ref, bih_ref, bhh_ref,
                  wfc_ref, bfc_ref, out_ref):
    """GRU recurrence over T steps + final FC layer.

    x_ref:   (T*Bp, E)      embedded tokens, time-major, flattened, bf16
    h0_ref:  (Bp, Hp)       initial hidden state (layer 0), f32
    wih_ref: (E,  3*Hp)     input-to-hidden weights, gate order [r|z|n], bf16
    whh_ref: (Hp, 3*Hp)     hidden-to-hidden weights, gate order [r|z|n], bf16
    bih_ref: (1, 3*Hp), bhh_ref: (1, 3*Hp)  biases, f32
    wfc_ref: (Hp, Cp), bfc_ref: (1, Cp)      final linear layer, f32
    out_ref: (Bp, Cp) f32
    """
    TB, _ = x_ref.shape
    Bp, Hp = h0_ref.shape
    T = TB // Bp
    G = 3 * Hp

    # ---- Hoisted input projection: one MXU matmul for ALL timesteps, bias folded in.
    gi_all = (jnp.dot(x_ref[...], wih_ref[...],
                      preferred_element_type=jnp.float32)
              + bih_ref[...])                         # (T*Bp, 3*Hp) f32

    whh = whh_ref[...]                                # (Hp, 3*Hp) bf16, loaded once
    bhh_b = jnp.broadcast_to(bhh_ref[...], (Bp, G))   # hoisted bias broadcast

    h = h0_ref[...]                                   # (Bp, Hp) f32

    # ---- Statically unrolled recurrence (T is a compile-time constant = 8).
    for t in range(T):
        # static, sublane-tile-aligned slice of the precomputed input projection
        gi = gi_all[t * Bp:(t + 1) * Bp, :]           # (Bp, 3*Hp) f32
        gh = (jnp.dot(h.astype(jnp.bfloat16), whh,
                      preferred_element_type=jnp.float32)
              + bhh_b)                                # (Bp, 3*Hp) f32

        # gate blocks are lane-aligned (Hp is a multiple of 128)
        i_r, i_z, i_n = gi[:, 0:Hp], gi[:, Hp:2 * Hp], gi[:, 2 * Hp:3 * Hp]
        h_r, h_z, h_n = gh[:, 0:Hp], gh[:, Hp:2 * Hp], gh[:, 2 * Hp:3 * Hp]

        r = jax.nn.sigmoid(i_r + h_r)
        z = jax.nn.sigmoid(i_z + h_z)
        n = jnp.tanh(i_n + r * h_n)
        h = (1.0 - z) * n + z * h

    # ---- Final Linear on the last hidden state; lane-dense (Bp, Cp) store.
    out_ref[...] = (jnp.dot(h, wfc_ref[...],
                            preferred_element_type=jnp.float32)
                    + bfc_ref[...])


def _pad_gate_blocks(w, H, H_pad, rows_pad):
    """(D, 3H) -> (rows_pad, 3*H_pad); each gate [r|z|n] gets its own 128-lane block."""
    D = w.shape[0]
    gates = [w[:, g * H:(g + 1) * H] for g in range(3)]
    gates = [jnp.pad(g, ((0, rows_pad - D), (0, H_pad - H))) for g in gates]
    return jnp.concatenate(gates, axis=1)


def neural_network_forward(token_ids, hidden, params):
    """Mirrors NeuralNetwork.forward(input, hidden).

    token_ids: (B, T) int32
    hidden:    (num_layers=1, B, H) float32
    returns:   (B, num_classes) float32
    """
    emb = params["embedding"]            # (V, E)
    B, T = token_ids.shape
    E = emb.shape[1]
    H = params["w_hh"].shape[0]
    C = params["w_fc"].shape[1]

    B_pad = _round_up(B, 8)              # sublane minimum
    H_pad = _round_up(H, 128)            # lane-aligned gate blocks
    C_pad = _round_up(C, 128)            # lane-dense output store

    # Embedding lookup gathered directly into time-major order (no extra transpose),
    # then batch-padded and flattened so the kernel sees (T*B_pad, E).
    # TODO(synk): embedding row-gather stays in plain JAX (data-dependent gather).
    x_tm = jnp.take(emb, token_ids.T, axis=0)               # (T, B, E)
    x_tm = jnp.pad(x_tm, ((0, 0), (0, B_pad - B), (0, 0)))  # (T, B_pad, E)
    x_flat = x_tm.reshape(T * B_pad, E).astype(jnp.bfloat16)

    h0 = jnp.pad(hidden[0], ((0, B_pad - B), (0, H_pad - H)))      # (B_pad, H_pad)

    w_ih_p = _pad_gate_blocks(params["w_ih"], H, H_pad, E).astype(jnp.bfloat16)
    w_hh_p = _pad_gate_blocks(params["w_hh"], H, H_pad, H_pad).astype(jnp.bfloat16)
    b_ih_p = _pad_gate_blocks(params["b_ih"], H, H_pad, 1)          # (1, 3*H_pad) f32
    b_hh_p = _pad_gate_blocks(params["b_hh"], H, H_pad, 1)

    w_fc_p = jnp.pad(params["w_fc"], ((0, H_pad - H), (0, C_pad - C)))  # (H_pad, C_pad)
    b_fc_p = jnp.pad(params["b_fc"], ((0, 0), (0, C_pad - C)))          # (1, C_pad)

    vmem = pl.BlockSpec(memory_space=pltpu.MemorySpace.VMEM)

    out_p = pl.pallas_call(
        gru_fc_kernel,
        out_shape=jax.ShapeDtypeStruct((B_pad, C_pad), jnp.float32),
        in_specs=[vmem] * 8,
        out_specs=vmem,
    )(x_flat, h0,
      w_ih_p, w_hh_p, b_ih_p, b_hh_p,
      w_fc_p, b_fc_p)

    return out_p[:B, :C]


def reference_forward(token_ids, hidden, params):
    """Pure-JAX f32 reference matching torch GRU semantics (gate order r,z,n)."""
    emb = params["embedding"]
    x = jnp.take(emb, token_ids, axis=0)           # (B, T, E)
    h = hidden[0]
    H = params["w_hh"].shape[0]
    T = x.shape[1]
    for t in range(T):
        x_t = x[:, t, :]
        gi = x_t @ params["w_ih"] + params["b_ih"]
        gh = h @ params["w_hh"] + params["b_hh"]
        i_r, i_z, i_n = gi[:, :H], gi[:, H:2 * H], gi[:, 2 * H:]
        h_r, h_z, h_n = gh[:, :H], gh[:, H:2 * H], gh[:, 2 * H:]
        r = jax.nn.sigmoid(i_r + h_r)
        z = jax.nn.sigmoid(i_z + h_z)
        n = jnp.tanh(i_n + r * h_n)
        h = (1.0 - z) * n + z * h
    return h @ params["w_fc"] + params["b_fc"]


def init_params(key, vocab_size, emb_dim, hidden_size, num_classes):
    ks = jax.random.split(key, 8)
    scale = 0.1
    return {
        "embedding": jax.random.normal(ks[0], (vocab_size, emb_dim), jnp.float32) * scale,
        # PyTorch stores weight_ih_l0 as (3H, E); we keep the transposed (E, 3H).
        "w_ih": jax.random.normal(ks[1], (emb_dim, 3 * hidden_size), jnp.float32) * scale,
        "w_hh": jax.random.normal(ks[2], (hidden_size, 3 * hidden_size), jnp.float32) * scale,
        "b_ih": jax.random.normal(ks[3], (1, 3 * hidden_size), jnp.float32) * scale,
        "b_hh": jax.random.normal(ks[4], (1, 3 * hidden_size), jnp.float32) * scale,
        "w_fc": jax.random.normal(ks[5], (hidden_size, num_classes), jnp.float32) * scale,
        "b_fc": jax.random.normal(ks[6], (1, num_classes), jnp.float32) * scale,
    }


if __name__ == "__main__":
    B, T = 2, 8
    VOCAB, EMB_DIM, HIDDEN, NUM_CLASSES = 50, 32, 32, 8

    key = jax.random.PRNGKey(0)
    k_params, k_ids = jax.random.split(key)
    params = init_params(k_params, VOCAB, EMB_DIM, HIDDEN, NUM_CLASSES)

    token_ids = jax.random.randint(k_ids, (B, T), 0, VOCAB, dtype=jnp.int32)
    # init_hidden(batch_size): zeros of shape (num_recur_layer, B, hidden_size)
    hidden0 = jnp.zeros((1, B, HIDDEN), jnp.float32)

    out = neural_network_forward(token_ids, hidden0, params)
    out = jax.block_until_ready(out)

    ref = reference_forward(token_ids, hidden0, params)
    assert out.shape == (B, NUM_CLASSES)
    # bf16 MXU operands vs f32 reference -> loosened tolerance.
    assert jnp.allclose(out, ref, atol=1e-2, rtol=1e-2), "mismatch vs reference"

    print("KERNEL_OK")
</pallas_src>

<mosaic_0001>
module attributes {stable_mosaic.version = 11 : i64} {
  func.func @gru_fc_kernel(%arg0: memref<64x32xbf16, #tpu.memory_space<vmem>>, %arg1: memref<8x128xf32, #tpu.memory_space<vmem>>, %arg2: memref<32x384xbf16, #tpu.memory_space<vmem>>, %arg3: memref<128x384xbf16, #tpu.memory_space<vmem>>, %arg4: memref<1x384xf32, #tpu.memory_space<vmem>>, %arg5: memref<1x384xf32, #tpu.memory_space<vmem>>, %arg6: memref<128x128xf32, #tpu.memory_space<vmem>>, %arg7: memref<1x128xf32, #tpu.memory_space<vmem>>, %arg8: memref<8x128xf32, #tpu.memory_space<vmem>>) attributes {dimension_semantics = [], scalar_prefetch = 0 : i64, scratch_operands = 0 : i64, tpu.core_type = #tpu.core_type<tc>} {
    %c0 = arith.constant 0 : index
    %c0_0 = arith.constant 0 : index
    %0 = vector.load %arg0[%c0, %c0_0] : memref<64x32xbf16, #tpu.memory_space<vmem>>, vector<64x32xbf16>
    %c0_1 = arith.constant 0 : index
    %c0_2 = arith.constant 0 : index
    %1 = vector.load %arg2[%c0_1, %c0_2] : memref<32x384xbf16, #tpu.memory_space<vmem>>, vector<32x384xbf16>
    %cst = arith.constant dense<0.000000e+00> : vector<64x384xf32>
    %2 = tpu.matmul %0, %1, %cst {dimension_numbers = #tpu.dot_dimension_numbers<[1], [0], [0], [1], [0, 0, 1, 1], [], []>} : vector<64x32xbf16>, vector<32x384xbf16>, vector<64x384xf32> -> vector<64x384xf32>
    %c0_3 = arith.constant 0 : index
    %c0_4 = arith.constant 0 : index
    %3 = vector.load %arg4[%c0_3, %c0_4] : memref<1x384xf32, #tpu.memory_space<vmem>>, vector<1x384xf32>
    %4 = vector.broadcast %3 : vector<1x384xf32> to vector<64x384xf32>
    %5 = arith.addf %2, %4 : vector<64x384xf32>
    %c0_5 = arith.constant 0 : index
    %c0_6 = arith.constant 0 : index
    %6 = vector.load %arg3[%c0_5, %c0_6] : memref<128x384xbf16, #tpu.memory_space<vmem>>, vector<128x384xbf16>
    %c0_7 = arith.constant 0 : index
    %c0_8 = arith.constant 0 : index
    %7 = vector.load %arg5[%c0_7, %c0_8] : memref<1x384xf32, #tpu.memory_space<vmem>>, vector<1x384xf32>
    %8 = vector.shape_cast %7 : vector<1x384xf32> to vector<1x384xf32>
    %9 = vector.broadcast %8 : vector<1x384xf32> to vector<8x384xf32>
    %c0_9 = arith.constant 0 : index
    %c0_10 = arith.constant 0 : index
    %10 = vector.load %arg1[%c0_9, %c0_10] : memref<8x128xf32, #tpu.memory_space<vmem>>, vector<8x128xf32>
    %11 = vector.extract_strided_slice %5 {offsets = [0, 0], sizes = [8, 384], strides = [1, 1]} : vector<64x384xf32> to vector<8x384xf32>
    %12 = arith.truncf %10 : vector<8x128xf32> to vector<8x128xbf16>
    %cst_11 = arith.constant dense<0.000000e+00> : vector<8x384xf32>
    %13 = tpu.matmul %12, %6, %cst_11 {dimension_numbers = #tpu.dot_dimension_numbers<[1], [0], [0], [1], [0, 0, 1, 1], [], []>} : vector<8x128xbf16>, vector<128x384xbf16>, vector<8x384xf32> -> vector<8x384xf32>
    %14 = arith.addf %13, %9 : vector<8x384xf32>
    %15 = vector.extract_strided_slice %11 {offsets = [0, 0], sizes = [8, 128], strides = [1, 1]} : vector<8x384xf32> to vector<8x128xf32>
    %16 = vector.extract_strided_slice %11 {offsets = [0, 128], sizes = [8, 128], strides = [1, 1]} : vector<8x384xf32> to vector<8x128xf32>
    %17 = vector.extract_strided_slice %11 {offsets = [0, 256], sizes = [8, 128], strides = [1, 1]} : vector<8x384xf32> to vector<8x128xf32>
    %18 = vector.extract_strided_slice %14 {offsets = [0, 0], sizes = [8, 128], strides = [1, 1]} : vector<8x384xf32> to vector<8x128xf32>
    %19 = vector.extract_strided_slice %14 {offsets = [0, 128], sizes = [8, 128], strides = [1, 1]} : vector<8x384xf32> to vector<8x128xf32>
    %20 = vector.extract_strided_slice %14 {offsets = [0, 256], sizes = [8, 128], strides = [1, 1]} : vector<8x384xf32> to vector<8x128xf32>
    %21 = arith.addf %15, %18 : vector<8x128xf32>
    %22 = arith.negf %21 : vector<8x128xf32>
    %23 = math.exp %22 : vector<8x128xf32>
    %cst_12 = arith.constant 1.000000e+00 : f32
    %24 = vector.broadcast %cst_12 : f32 to vector<8x128xf32>
    %25 = arith.addf %24, %23 : vector<8x128xf32>
    %26 = arith.divf %24, %25 : vector<8x128xf32>
    %27 = arith.addf %16, %19 : vector<8x128xf32>
    %28 = arith.negf %27 : vector<8x128xf32>
    %29 = math.exp %28 : vector<8x128xf32>
    %cst_13 = arith.constant 1.000000e+00 : f32
    %30 = vector.broadcast %cst_13 : f32 to vector<8x128xf32>
    %31 = arith.addf %30, %29 : vector<8x128xf32>
    %32 = arith.divf %30, %31 : vector<8x128xf32>
    %33 = arith.mulf %26, %20 : vector<8x128xf32>
    %34 = arith.addf %17, %33 : vector<8x128xf32>
    %35 = math.tanh %34 : vector<8x128xf32>
    %cst_14 = arith.constant 1.000000e+00 : f32
    %36 = vector.broadcast %cst_14 : f32 to vector<8x128xf32>
    %37 = arith.subf %36, %32 : vector<8x128xf32>
    %38 = arith.mulf %37, %35 : vector<8x128xf32>
    %39 = arith.mulf %32, %10 : vector<8x128xf32>
    %40 = arith.addf %38, %39 : vector<8x128xf32>
    %41 = vector.extract_strided_slice %5 {offsets = [8, 0], sizes = [8, 384], strides = [1, 1]} : vector<64x384xf32> to vector<8x384xf32>
    %42 = arith.truncf %40 : vector<8x128xf32> to vector<8x128xbf16>
    %cst_15 = arith.constant dense<0.000000e+00> : vector<8x384xf32>
    %43 = tpu.matmul %42, %6, %cst_15 {dimension_numbers = #tpu.dot_dimension_numbers<[1], [0], [0], [1], [0, 0, 1, 1], [], []>} : vector<8x128xbf16>, vector<128x384xbf16>, vector<8x384xf32> -> vector<8x384xf32>
    %44 = arith.addf %43, %9 : vector<8x384xf32>
    %45 = vector.extract_strided_slice %41 {offsets = [0, 0], sizes = [8, 128], strides = [1, 1]} : vector<8x384xf32> to vector<8x128xf32>
    %46 = vector.extract_strided_slice %41 {offsets = [0, 128], sizes = [8, 128], strides = [1, 1]} : vector<8x384xf32> to vector<8x128xf32>
    %47 = vector.extract_strided_slice %41 {offsets = [0, 256], sizes = [8, 128], strides = [1, 1]} : vector<8x384xf32> to vector<8x128xf32>
    %48 = vector.extract_strided_slice %44 {offsets = [0, 0], sizes = [8, 128], strides = [1, 1]} : vector<8x384xf32> to vector<8x128xf32>
    %49 = vector.extract_strided_slice %44 {offsets = [0, 128], sizes = [8, 128], strides = [1, 1]} : vector<8x384xf32> to vector<8x128xf32>
    %50 = vector.extract_strided_slice %44 {offsets = [0, 256], sizes = [8, 128], strides = [1, 1]} : vector<8x384xf32> to vector<8x128xf32>
    %51 = arith.addf %45, %48 : vector<8x128xf32>
    %52 = arith.negf %51 : vector<8x128xf32>
    %53 = math.exp %52 : vector<8x128xf32>
    %cst_16 = arith.constant 1.000000e+00 : f32
    %54 = vector.broadcast %cst_16 : f32 to vector<8x128xf32>
    %55 = arith.addf %54, %53 : vector<8x128xf32>
    %56 = arith.divf %54, %55 : vector<8x128xf32>
    %57 = arith.addf %46, %49 : vector<8x128xf32>
    %58 = arith.negf %57 : vector<8x128xf32>
    %59 = math.exp %58 : vector<8x128xf32>
    %cst_17 = arith.constant 1.000000e+00 : f32
    %60 = vector.broadcast %cst_17 : f32 to vector<8x128xf32>
    %61 = arith.addf %60, %59 : vector<8x128xf32>
    %62 = arith.divf %60, %61 : vector<8x128xf32>
    %63 = arith.mulf %56, %50 : vector<8x128xf32>
    %64 = arith.addf %47, %63 : vector<8x128xf32>
    %65 = math.tanh %64 : vector<8x128xf32>
    %cst_18 = arith.constant 1.000000e+00 : f32
    %66 = vector.broadcast %cst_18 : f32 to vector<8x128xf32>
    %67 = arith.subf %66, %62 : vector<8x128xf32>
    %68 = arith.mulf %67, %65 : vector<8x128xf32>
    %69 = arith.mulf %62, %40 : vector<8x128xf32>
    %70 = arith.addf %68, %69 : vector<8x128xf32>
    %71 = vector.extract_strided_slice %5 {offsets = [16, 0], sizes = [8, 384], strides = [1, 1]} : vector<64x384xf32> to vector<8x384xf32>
    %72 = arith.truncf %70 : vector<8x128xf32> to vector<8x128xbf16>
    %cst_19 = arith.constant dense<0.000000e+00> : vector<8x384xf32>
    %73 = tpu.matmul %72, %6, %cst_19 {dimension_numbers = #tpu.dot_dimension_numbers<[1], [0], [0], [1], [0, 0, 1, 1], [], []>} : vector<8x128xbf16>, vector<128x384xbf16>, vector<8x384xf32> -> vector<8x384xf32>
    %74 = arith.addf %73, %9 : vector<8x384xf32>
    %75 = vector.extract_strided_slice %71 {offsets = [0, 0], sizes = [8, 128], strides = [1, 1]} : vector<8x384xf32> to vector<8x128xf32>
    %76 = vector.extract_strided_slice %71 {offsets = [0, 128], sizes = [8, 128], strides = [1, 1]} : vector<8x384xf32> to vector<8x128xf32>
    %77 = vector.extract_strided_slice %71 {offsets = [0, 256], sizes = [8, 128], strides = [1, 1]} : vector<8x384xf32> to vector<8x128xf32>
    %78 = vector.extract_strided_slice %74 {offsets = [0, 0], sizes = [8, 128], strides = [1, 1]} : vector<8x384xf32> to vector<8x128xf32>
    %79 = vector.extract_strided_slice %74 {offsets = [0, 128], sizes = [8, 128], strides = [1, 1]} : vector<8x384xf32> to vector<8x128xf32>
    %80 = vector.extract_strided_slice %74 {offsets = [0, 256], sizes = [8, 128], strides = [1, 1]} : vector<8x384xf32> to vector<8x128xf32>
    %81 = arith.addf %75, %78 : vector<8x128xf32>
    %82 = arith.negf %81 : vector<8x128xf32>
    %83 = math.exp %82 : vector<8x128xf32>
    %cst_20 = arith.constant 1.000000e+00 : f32
    %84 = vector.broadcast %cst_20 : f32 to vector<8x128xf32>
    %85 = arith.addf %84, %83 : vector<8x128xf32>
    %86 = arith.divf %84, %85 : vector<8x128xf32>
    %87 = arith.addf %76, %79 : vector<8x128xf32>
    %88 = arith.negf %87 : vector<8x128xf32>
    %89 = math.exp %88 : vector<8x128xf32>
    %cst_21 = arith.constant 1.000000e+00 : f32
    %90 = vector.broadcast %cst_21 : f32 to vector<8x128xf32>
    %91 = arith.addf %90, %89 : vector<8x128xf32>
    %92 = arith.divf %90, %91 : vector<8x128xf32>
    %93 = arith.mulf %86, %80 : vector<8x128xf32>
    %94 = arith.addf %77, %93 : vector<8x128xf32>
    %95 = math.tanh %94 : vector<8x128xf32>
    %cst_22 = arith.constant 1.000000e+00 : f32
    %96 = vector.broadcast %cst_22 : f32 to vector<8x128xf32>
    %97 = arith.subf %96, %92 : vector<8x128xf32>
    %98 = arith.mulf %97, %95 : vector<8x128xf32>
    %99 = arith.mulf %92, %70 : vector<8x128xf32>
    %100 = arith.addf %98, %99 : vector<8x128xf32>
    %101 = vector.extract_strided_slice %5 {offsets = [24, 0], sizes = [8, 384], strides = [1, 1]} : vector<64x384xf32> to vector<8x384xf32>
    %102 = arith.truncf %100 : vector<8x128xf32> to vector<8x128xbf16>
    %cst_23 = arith.constant dense<0.000000e+00> : vector<8x384xf32>
    %103 = tpu.matmul %102, %6, %cst_23 {dimension_numbers = #tpu.dot_dimension_numbers<[1], [0], [0], [1], [0, 0, 1, 1], [], []>} : vector<8x128xbf16>, vector<128x384xbf16>, vector<8x384xf32> -> vector<8x384xf32>
    %104 = arith.addf %103, %9 : vector<8x384xf32>
    %105 = vector.extract_strided_slice %101 {offsets = [0, 0], sizes = [8, 128], strides = [1, 1]} : vector<8x384xf32> to vector<8x128xf32>
    %106 = vector.extract_strided_slice %101 {offsets = [0, 128], sizes = [8, 128], strides = [1, 1]} : vector<8x384xf32> to vector<8x128xf32>
    %107 = vector.extract_strided_slice %101 {offsets = [0, 256], sizes = [8, 128], strides = [1, 1]} : vector<8x384xf32> to vector<8x128xf32>
    %108 = vector.extract_strided_slice %104 {offsets = [0, 0], sizes = [8, 128], strides = [1, 1]} : vector<8x384xf32> to vector<8x128xf32>
    %109 = vector.extract_strided_slice %104 {offsets = [0, 128], sizes = [8, 128], strides = [1, 1]} : vector<8x384xf32> to vector<8x128xf32>
    %110 = vector.extract_strided_slice %104 {offsets = [0, 256], sizes = [8, 128], strides = [1, 1]} : vector<8x384xf32> to vector<8x128xf32>
    %111 = arith.addf %105, %108 : vector<8x128xf32>
    %112 = arith.negf %111 : vector<8x128xf32>
    %113 = math.exp %112 : vector<8x128xf32>
    %cst_24 = arith.constant 1.000000e+00 : f32
    %114 = vector.broadcast %cst_24 : f32 to vector<8x128xf32>
    %115 = arith.addf %114, %113 : vector<8x128xf32>
    %116 = arith.divf %114, %115 : vector<8x128xf32>
    %117 = arith.addf %106, %109 : vector<8x128xf32>
    %118 = arith.negf %117 : vector<8x128xf32>
    %119 = math.exp %118 : vector<8x128xf32>
    %cst_25 = arith.constant 1.000000e+00 : f32
    %120 = vector.broadcast %cst_25 : f32 to vector<8x128xf32>
    %121 = arith.addf %120, %119 : vector<8x128xf32>
    %122 = arith.divf %120, %121 : vector<8x128xf32>
    %123 = arith.mulf %116, %110 : vector<8x128xf32>
    %124 = arith.addf %107, %123 : vector<8x128xf32>
    %125 = math.tanh %124 : vector<8x128xf32>
    %cst_26 = arith.constant 1.000000e+00 : f32
    %126 = vector.broadcast %cst_26 : f32 to vector<8x128xf32>
    %127 = arith.subf %126, %122 : vector<8x128xf32>
    %128 = arith.mulf %127, %125 : vector<8x128xf32>
    %129 = arith.mulf %122, %100 : vector<8x128xf32>
    %130 = arith.addf %128, %129 : vector<8x128xf32>
    %131 = vector.extract_strided_slice %5 {offsets = [32, 0], sizes = [8, 384], strides = [1, 1]} : vector<64x384xf32> to vector<8x384xf32>
    %132 = arith.truncf %130 : vector<8x128xf32> to vector<8x128xbf16>
    %cst_27 = arith.constant dense<0.000000e+00> : vector<8x384xf32>
    %133 = tpu.matmul %132, %6, %cst_27 {dimension_numbers = #tpu.dot_dimension_numbers<[1], [0], [0], [1], [0, 0, 1, 1], [], []>} : vector<8x128xbf16>, vector<128x384xbf16>, vector<8x384xf32> -> vector<8x384xf32>
    %134 = arith.addf %133, %9 : vector<8x384xf32>
    %135 = vector.extract_strided_slice %131 {offsets = [0, 0], sizes = [8, 128], strides = [1, 1]} : vector<8x384xf32> to vector<8x128xf32>
    %136 = vector.extract_strided_slice %131 {offsets = [0, 128], sizes = [8, 128], strides = [1, 1]} : vector<8x384xf32> to vector<8x128xf32>
    %137 = vector.extract_strided_slice %131 {offsets = [0, 256], sizes = [8, 128], strides = [1, 1]} : vector<8x384xf32> to vector<8x128xf32>
    %138 = vector.extract_strided_slice %134 {offsets = [0, 0], sizes = [8, 128], strides = [1, 1]} : vector<8x384xf32> to vector<8x128xf32>
    %139 = vector.extract_strided_slice %134 {offsets = [0, 128], sizes = [8, 128], strides = [1, 1]} : vector<8x384xf32> to vector<8x128xf32>
    %140 = vector.extract_strided_slice %134 {offsets = [0, 256], sizes = [8, 128], strides = [1, 1]} : vector<8x384xf32> to vector<8x128xf32>
    %141 = arith.addf %135, %138 : vector<8x128xf32>
    %142 = arith.negf %141 : vector<8x128xf32>
    %143 = math.exp %142 : vector<8x128xf32>
    %cst_28 = arith.constant 1.000000e+00 : f32
    %144 = vector.broadcast %cst_28 : f32 to vector<8x128xf32>
    %145 = arith.addf %144, %143 : vector<8x128xf32>
    %146 = arith.divf %144, %145 : vector<8x128xf32>
    %147 = arith.addf %136, %139 : vector<8x128xf32>
    %148 = arith.negf %147 : vector<8x128xf32>
    %149 = math.exp %148 : vector<8x128xf32>
    %cst_29 = arith.constant 1.000000e+00 : f32
    %150 = vector.broadcast %cst_29 : f32 to vector<8x128xf32>
    %151 = arith.addf %150, %149 : vector<8x128xf32>
    %152 = arith.divf %150, %151 : vector<8x128xf32>
    %153 = arith.mulf %146, %140 : vector<8x128xf32>
    %154 = arith.addf %137, %153 : vector<8x128xf32>
    %155 = math.tanh %154 : vector<8x128xf32>
    %cst_30 = arith.constant 1.000000e+00 : f32
    %156 = vector.broadcast %cst_30 : f32 to vector<8x128xf32>
    %157 = arith.subf %156, %152 : vector<8x128xf32>
    %158 = arith.mulf %157, %155 : vector<8x128xf32>
    %159 = arith.mulf %152, %130 : vector<8x128xf32>
    %160 = arith.addf %158, %159 : vector<8x128xf32>
    %161 = vector.extract_strided_slice %5 {offsets = [40, 0], sizes = [8, 384], strides = [1, 1]} : vector<64x384xf32> to vector<8x384xf32>
    %162 = arith.truncf %160 : vector<8x128xf32> to vector<8x128xbf16>
    %cst_31 = arith.constant dense<0.000000e+00> : vector<8x384xf32>
    %163 = tpu.matmul %162, %6, %cst_31 {dimension_numbers = #tpu.dot_dimension_numbers<[1], [0], [0], [1], [0, 0, 1, 1], [], []>} : vector<8x128xbf16>, vector<128x384xbf16>, vector<8x384xf32> -> vector<8x384xf32>
    %164 = arith.addf %163, %9 : vector<8x384xf32>
    %165 = vector.extract_strided_slice %161 {offsets = [0, 0], sizes = [8, 128], strides = [1, 1]} : vector<8x384xf32> to vector<8x128xf32>
    %166 = vector.extract_strided_slice %161 {offsets = [0, 128], sizes = [8, 128], strides = [1, 1]} : vector<8x384xf32> to vector<8x128xf32>
    %167 = vector.extract_strided_slice %161 {offsets = [0, 256], sizes = [8, 128], strides = [1, 1]} : vector<8x384xf32> to vector<8x128xf32>
    %168 = vector.extract_strided_slice %164 {offsets = [0, 0], sizes = [8, 128], strides = [1, 1]} : vector<8x384xf32> to vector<8x128xf32>
    %169 = vector.extract_strided_slice %164 {offsets = [0, 128], sizes = [8, 128], strides = [1, 1]} : vector<8x384xf32> to vector<8x128xf32>
    %170 = vector.extract_strided_slice %164 {offsets = [0, 256], sizes = [8, 128], strides = [1, 1]} : vector<8x384xf32> to vector<8x128xf32>
    %171 = arith.addf %165, %168 : vector<8x128xf32>
    %172 = arith.negf %171 : vector<8x128xf32>
    %173 = math.exp %172 : vector<8x128xf32>
    %cst_32 = arith.constant 1.000000e+00 : f32
    %174 = vector.broadcast %cst_32 : f32 to vector<8x128xf32>
    %175 = arith.addf %174, %173 : vector<8x128xf32>
    %176 = arith.divf %174, %175 : vector<8x128xf32>
    %177 = arith.addf %166, %169 : vector<8x128xf32>
    %178 = arith.negf %177 : vector<8x128xf32>
    %179 = math.exp %178 : vector<8x128xf32>
    %cst_33 = arith.constant 1.000000e+00 : f32
    %180 = vector.broadcast %cst_33 : f32 to vector<8x128xf32>
    %181 = arith.addf %180, %179 : vector<8x128xf32>
    %182 = arith.divf %180, %181 : vector<8x128xf32>
    %183 = arith.mulf %176, %170 : vector<8x128xf32>
    %184 = arith.addf %167, %183 : vector<8x128xf32>
    %185 = math.tanh %184 : vector<8x128xf32>
    %cst_34 = arith.constant 1.000000e+00 : f32
    %186 = vector.broadcast %cst_34 : f32 to vector<8x128xf32>
    %187 = arith.subf %186, %182 : vector<8x128xf32>
    %188 = arith.mulf %187, %185 : vector<8x128xf32>
    %189 = arith.mulf %182, %160 : vector<8x128xf32>
    %190 = arith.addf %188, %189 : vector<8x128xf32>
    %191 = vector.extract_strided_slice %5 {offsets = [48, 0], sizes = [8, 384], strides = [1, 1]} : vector<64x384xf32> to vector<8x384xf32>
    %192 = arith.truncf %190 : vector<8x128xf32> to vector<8x128xbf16>
    %cst_35 = arith.constant dense<0.000000e+00> : vector<8x384xf32>
    %193 = tpu.matmul %192, %6, %cst_35 {dimension_numbers = #tpu.dot_dimension_numbers<[1], [0], [0], [1], [0, 0, 1, 1], [], []>} : vector<8x128xbf16>, vector<128x384xbf16>, vector<8x384xf32> -> vector<8x384xf32>
    %194 = arith.addf %193, %9 : vector<8x384xf32>
    %195 = vector.extract_strided_slice %191 {offsets = [0, 0], sizes = [8, 128], strides = [1, 1]} : vector<8x384xf32> to vector<8x128xf32>
    %196 = vector.extract_strided_slice %191 {offsets = [0, 128], sizes = [8, 128], strides = [1, 1]} : vector<8x384xf32> to vector<8x128xf32>
    %197 = vector.extract_strided_slice %191 {offsets = [0, 256], sizes = [8, 128], strides = [1, 1]} : vector<8x384xf32> to vector<8x128xf32>
    %198 = vector.extract_strided_slice %194 {offsets = [0, 0], sizes = [8, 128], strides = [1, 1]} : vector<8x384xf32> to vector<8x128xf32>
    %199 = vector.extract_strided_slice %194 {offsets = [0, 128], sizes = [8, 128], strides = [1, 1]} : vector<8x384xf32> to vector<8x128xf32>
    %200 = vector.extract_strided_slice %194 {offsets = [0, 256], sizes = [8, 128], strides = [1, 1]} : vector<8x384xf32> to vector<8x128xf32>
    %201 = arith.addf %195, %198 : vector<8x128xf32>
    %202 = arith.negf %201 : vector<8x128xf32>
    %203 = math.exp %202 : vector<8x128xf32>
    %cst_36 = arith.constant 1.000000e+00 : f32
    %204 = vector.broadcast %cst_36 : f32 to vector<8x128xf32>
    %205 = arith.addf %204, %203 : vector<8x128xf32>
    %206 = arith.divf %204, %205 : vector<8x128xf32>
    %207 = arith.addf %196, %199 : vector<8x128xf32>
    %208 = arith.negf %207 : vector<8x128xf32>
    %209 = math.exp %208 : vector<8x128xf32>
    %cst_37 = arith.constant 1.000000e+00 : f32
    %210 = vector.broadcast %cst_37 : f32 to vector<8x128xf32>
    %211 = arith.addf %210, %209 : vector<8x128xf32>
    %212 = arith.divf %210, %211 : vector<8x128xf32>
    %213 = arith.mulf %206, %200 : vector<8x128xf32>
    %214 = arith.addf %197, %213 : vector<8x128xf32>
    %215 = math.tanh %214 : vector<8x128xf32>
    %cst_38 = arith.constant 1.000000e+00 : f32
    %216 = vector.broadcast %cst_38 : f32 to vector<8x128xf32>
    %217 = arith.subf %216, %212 : vector<8x128xf32>
    %218 = arith.mulf %217, %215 : vector<8x128xf32>
    %219 = arith.mulf %212, %190 : vector<8x128xf32>
    %220 = arith.addf %218, %219 : vector<8x128xf32>
    %221 = vector.extract_strided_slice %5 {offsets = [56, 0], sizes = [8, 384], strides = [1, 1]} : vector<64x384xf32> to vector<8x384xf32>
    %222 = arith.truncf %220 : vector<8x128xf32> to vector<8x128xbf16>
    %cst_39 = arith.constant dense<0.000000e+00> : vector<8x384xf32>
    %223 = tpu.matmul %222, %6, %cst_39 {dimension_numbers = #tpu.dot_dimension_numbers<[1], [0], [0], [1], [0, 0, 1, 1], [], []>} : vector<8x128xbf16>, vector<128x384xbf16>, vector<8x384xf32> -> vector<8x384xf32>
    %224 = arith.addf %223, %9 : vector<8x384xf32>
    %225 = vector.extract_strided_slice %221 {offsets = [0, 0], sizes = [8, 128], strides = [1, 1]} : vector<8x384xf32> to vector<8x128xf32>
    %226 = vector.extract_strided_slice %221 {offsets = [0, 128], sizes = [8, 128], strides = [1, 1]} : vector<8x384xf32> to vector<8x128xf32>
    %227 = vector.extract_strided_slice %221 {offsets = [0, 256], sizes = [8, 128], strides = [1, 1]} : vector<8x384xf32> to vector<8x128xf32>
    %228 = vector.extract_strided_slice %224 {offsets = [0, 0], sizes = [8, 128], strides = [1, 1]} : vector<8x384xf32> to vector<8x128xf32>
    %229 = vector.extract_strided_slice %224 {offsets = [0, 128], sizes = [8, 128], strides = [1, 1]} : vector<8x384xf32> to vector<8x128xf32>
    %230 = vector.extract_strided_slice %224 {offsets = [0, 256], sizes = [8, 128], strides = [1, 1]} : vector<8x384xf32> to vector<8x128xf32>
    %231 = arith.addf %225, %228 : vector<8x128xf32>
    %232 = arith.negf %231 : vector<8x128xf32>
    %233 = math.exp %232 : vector<8x128xf32>
    %cst_40 = arith.constant 1.000000e+00 : f32
    %234 = vector.broadcast %cst_40 : f32 to vector<8x128xf32>
    %235 = arith.addf %234, %233 : vector<8x128xf32>
    %236 = arith.divf %234, %235 : vector<8x128xf32>
    %237 = arith.addf %226, %229 : vector<8x128xf32>
    %238 = arith.negf %237 : vector<8x128xf32>
    %239 = math.exp %238 : vector<8x128xf32>
    %cst_41 = arith.constant 1.000000e+00 : f32
    %240 = vector.broadcast %cst_41 : f32 to vector<8x128xf32>
    %241 = arith.addf %240, %239 : vector<8x128xf32>
    %242 = arith.divf %240, %241 : vector<8x128xf32>
    %243 = arith.mulf %236, %230 : vector<8x128xf32>
    %244 = arith.addf %227, %243 : vector<8x128xf32>
    %245 = math.tanh %244 : vector<8x128xf32>
    %cst_42 = arith.constant 1.000000e+00 : f32
    %246 = vector.broadcast %cst_42 : f32 to vector<8x128xf32>
    %247 = arith.subf %246, %242 : vector<8x128xf32>
    %248 = arith.mulf %247, %245 : vector<8x128xf32>
    %249 = arith.mulf %242, %220 : vector<8x128xf32>
    %250 = arith.addf %248, %249 : vector<8x128xf32>
    %c0_43 = arith.constant 0 : index
    %c0_44 = arith.constant 0 : index
    %251 = vector.load %arg6[%c0_43, %c0_44] : memref<128x128xf32, #tpu.memory_space<vmem>>, vector<128x128xf32>
    %cst_45 = arith.constant dense<0.000000e+00> : vector<8x128xf32>
    %252 = tpu.matmul %250, %251, %cst_45 {dimension_numbers = #tpu.dot_dimension_numbers<[1], [0], [0], [1], [0, 0, 1, 1], [], []>} : vector<8x128xf32>, vector<128x128xf32>, vector<8x128xf32> -> vector<8x128xf32>
    %c0_46 = arith.constant 0 : index
    %c0_47 = arith.constant 0 : index
    %253 = vector.load %arg7[%c0_46, %c0_47] : memref<1x128xf32, #tpu.memory_space<vmem>>, vector<1x128xf32>
    %254 = vector.broadcast %253 : vector<1x128xf32> to vector<8x128xf32>
    %255 = arith.addf %252, %254 : vector<8x128xf32>
    %c0_48 = arith.constant 0 : index
    %c0_49 = arith.constant 0 : index
    %256 = vector.load %arg8[%c0_48, %c0_49] : memref<8x128xf32, #tpu.memory_space<vmem>>, vector<8x128xf32>
    tpu.vector_store %arg8[%c0_48, %c0_49], %255 {strides = array<i32>} : memref<8x128xf32, #tpu.memory_space<vmem>>, vector<8x128xf32>,
    return
  }
}

</mosaic_0001>

<llo_original>
// kernel: tpu_custom_call.1
$region0: #{tpu_custom_call.1}
  #allocation0 [shape = 'u32[]', space=smem, size = 0x4, offset = 0x4, fixed_abs, tag = 'smem constant byte address 0x4 - core index']
  #allocation1 [shape = 'u32[72,128]{1,0:T(1,128)}', space=vmem, size = 0x9000, scoped, tag = 'internal scratch']
  %s0 = inlined_call_operand.vmem [shape: bf16[64,32], index: 0, kind: input, shape index: {}]
  %s1 = inlined_call_operand.hbm [shape: f32[8,128], index: 1, kind: input, shape index: {}]
  %s2 = inlined_call_operand.vmem [shape: bf16[32,384], index: 2, kind: input, shape index: {}]
  %s3 = inlined_call_operand.hbm [shape: bf16[128,384], index: 3, kind: input, shape index: {}]
  %s4 = inlined_call_operand.vmem [shape: f32[1,384], index: 4, kind: input, shape index: {}]
  %s5 = inlined_call_operand.hbm [shape: f32[1,384], index: 5, kind: input, shape index: {}]
  %s6 = inlined_call_operand.hbm [shape: f32[128,128], index: 6, kind: input, shape index: {}]
  %s7 = inlined_call_operand.vmem [shape: f32[1,128], index: 7, kind: input, shape index: {}]
  %s8 = inlined_call_operand.hbm [shape: f32[8,128], index: 8, kind: output, shape index: {}]
  %s9 = sld [smem:[#allocation0]]
  $region58: #{tpu_custom_call.1} parent=0
    _
  %s11 = ssub.s32 1, %s9
  %s12 = scalar_select 0, %s11, %s9
  $region1: #{tpu_custom_call.1} parent=0
    #allocation2 [shape = 'u8[4096]{0}', space=vmem, size = 0x1000, scoped, tag = 'input window, operand 1, single buffered']
    #allocation3 [shape = 's32[1]{0}', space=sflag, size = 0x4, scoped, tag = 'scoped memory for tpu_custom_call.1']
    #allocation4 [shape = 's32[1]{0}', space=sflag, size = 0x4, scoped, tag = 'scoped memory for tpu_custom_call.1']
    #allocation5 [shape = 'u8[98304]{0}', space=vmem, size = 0x18000, scoped, tag = 'input window, operand 3, single buffered']
    #allocation6 [shape = 's32[1]{0}', space=sflag, size = 0x4, scoped, tag = 'scoped memory for tpu_custom_call.1']
    #allocation7 [shape = 'u8[1536]{0}', space=vmem, size = 0x800, scoped, tag = 'input window, operand 5, single buffered']
    #allocation8 [shape = 'u8[65536]{0}', space=vmem, size = 0x10000, scoped, tag = 'input window, operand 6, single buffered']
    #allocation9 [shape = 's32[1]{0}', space=sflag, size = 0x4, scoped, tag = 'scoped memory for tpu_custom_call.1']
    #allocation10 [shape = 'u8[4096]{0}', space=vmem, size = 0x1000, scoped, tag = 'output window, operand 0, single buffered']
    %13 = vsyncpa [#allocation3], 0
    %14 = vsyncpa [#allocation6], 0
    %15 = vsyncpa [#allocation9], 0
    %16 = vsyncpa [#allocation4], 0
    // Predicated region
    $region2: #{tpu_custom_call.1} parent=1 // pred_check
      _
    $region3: #{tpu_custom_call.1} parent=1 // pred_check_branch
      %18 = sbr.rel (0) target = $region5
    $region4: #{tpu_custom_call.1} parent=1 // pred_region
      _
    $region5: #{tpu_custom_call.1} parent=1 // pred_fallthru
      _
    // Predicated region
    $region6: #{tpu_custom_call.1} parent=1 // pred_check
      _
    $region7: #{tpu_custom_call.1} parent=1 // pred_check_branch
      %20 = sbr.rel (0) target = $region9
    $region8: #{tpu_custom_call.1} parent=1 // pred_region
      %22 = vsyncadd [#allocation3], 0
      %s24 = sshll.u32 %s1, 4
      %s25 = int_to_ptr.hbm [resolvable:$true] %s24
      %s26 = sshll.u32 [#allocation2], 4
      %s27 = int_to_ptr.vmem [resolvable:$true] %s26
      %29 = dma.hbm_to_vmem [thread:$0]  %s25, 128, %s27, [#allocation3]
    $region9: #{tpu_custom_call.1} parent=1 // pred_fallthru
      _
    // Predicated region
    $region10: #{tpu_custom_call.1} parent=1 // pred_check
      _
    $region11: #{tpu_custom_call.1} parent=1 // pred_check_branch
      %31 = sbr.rel (0) target = $region13
    $region12: #{tpu_custom_call.1} parent=1 // pred_region
      _
    $region13: #{tpu_custom_call.1} parent=1 // pred_fallthru
      _
    // Predicated region
    $region14: #{tpu_custom_call.1} parent=1 // pred_check
      _
    $region15: #{tpu_custom_call.1} parent=1 // pred_check_branch
      %33 = sbr.rel (0) target = $region17
    $region16: #{tpu_custom_call.1} parent=1 // pred_region
      %35 = vsyncadd [#allocation6], 0
      %s36 = sshll.u32 %s3, 4
      %s37 = int_to_ptr.hbm [resolvable:$true] %s36
      %s38 = sshll.u32 [#allocation5], 4
      %s39 = int_to_ptr.vmem [resolvable:$true] %s38
      %44 = dma.hbm_to_vmem [thread:$0]  %s37, 3072, %s39, [#allocation6], 192, 192, 12
    $region17: #{tpu_custom_call.1} parent=1 // pred_fallthru
      _
    // Predicated region
    $region18: #{tpu_custom_call.1} parent=1 // pred_check
      _
    $region19: #{tpu_custom_call.1} parent=1 // pred_check_branch
      %46 = sbr.rel (0) target = $region21
    $region20: #{tpu_custom_call.1} parent=1 // pred_region
      _
    $region21: #{tpu_custom_call.1} parent=1 // pred_fallthru
      _
    // Predicated region
    $region22: #{tpu_custom_call.1} parent=1 // pred_check
      _
    $region23: #{tpu_custom_call.1} parent=1 // pred_check_branch
      %48 = sbr.rel (0) target = $region25
    $region24: #{tpu_custom_call.1} parent=1 // pred_region
      %50 = vsyncadd [#allocation6], 0
      %s52 = sshll.u32 %s5, 4
      %s53 = int_to_ptr.hbm [resolvable:$true] %s52
      %s54 = sshll.u32 [#allocation7], 4
      %s55 = int_to_ptr.vmem [resolvable:$true] %s54
      %57 = dma.hbm_to_vmem [thread:$0]  %s53, 48, %s55, [#allocation6]
    $region25: #{tpu_custom_call.1} parent=1 // pred_fallthru
      _
    // Predicated region
    $region26: #{tpu_custom_call.1} parent=1 // pred_check
      _
    $region27: #{tpu_custom_call.1} parent=1 // pred_check_branch
      %59 = sbr.rel (0) target = $region29
    $region28: #{tpu_custom_call.1} parent=1 // pred_region
      %61 = vsyncadd [#allocation9], 0
      %s62 = sshll.u32 %s6, 4
      %s63 = int_to_ptr.hbm [resolvable:$true] %s62
      %s64 = sshll.u32 [#allocation8], 4
      %s65 = int_to_ptr.vmem [resolvable:$true] %s64
      %70 = dma.hbm_to_vmem [thread:$0]  %s63, 2048, %s65, [#allocation9], 128, 128, 8
    $region29: #{tpu_custom_call.1} parent=1 // pred_fallthru
      _
    // Predicated region
    $region30: #{tpu_custom_call.1} parent=1 // pred_check
      _
    $region31: #{tpu_custom_call.1} parent=1 // pred_check_branch
      %72 = sbr.rel (0) target = $region33
    $region32: #{tpu_custom_call.1} parent=1 // pred_region
      _
    $region33: #{tpu_custom_call.1} parent=1 // pred_fallthru
      _
    // Predicated region
    $region34: #{tpu_custom_call.1} parent=1 // pred_check
      _
    $region35: #{tpu_custom_call.1} parent=1 // pred_check_branch
      %74 = sbr.rel (0) target = $region37
    $region36: #{tpu_custom_call.1} parent=1 // pred_region
      %76 = dma.done [#allocation3], 128
    $region37: #{tpu_custom_call.1} parent=1 // pred_fallthru
      _
    // Predicated region
    $region38: #{tpu_custom_call.1} parent=1 // pred_check
      _
    $region39: #{tpu_custom_call.1} parent=1 // pred_check_branch
      %78 = sbr.rel (0) target = $region41
    $region40: #{tpu_custom_call.1} parent=1 // pred_region
      %80 = dma.done [#allocation6], 3072
    $region41: #{tpu_custom_call.1} parent=1 // pred_fallthru
      _
    // Predicated region
    $region42: #{tpu_custom_call.1} parent=1 // pred_check
      _
    $region43: #{tpu_custom_call.1} parent=1 // pred_check_branch
      %82 = sbr.rel (0) target = $region45
    $region44: #{tpu_custom_call.1} parent=1 // pred_region
      %84 = dma.done [#allocation6], 48
    $region45: #{tpu_custom_call.1} parent=1 // pred_fallthru
      _
    // Predicated region
    $region46: #{tpu_custom_call.1} parent=1 // pred_check
      _
    $region47: #{tpu_custom_call.1} parent=1 // pred_check_branch
      %86 = sbr.rel (0) target = $region49
    $region48: #{tpu_custom_call.1} parent=1 // pred_region
      %88 = dma.done [#allocation9], 2048
    $region49: #{tpu_custom_call.1} parent=1 // pred_fallthru
      _
    %v90 = vld [vmem:[%s0] sm:$0xf]
    %v91 = vld [vmem:[%s0 + $0x4] sm:$0xf]
    %v92 = vld [vmem:[%s0 + $0x8] sm:$0xf]
    %v93 = vld [vmem:[%s0 + $0xc] sm:$0xf]
    %v94 = vld [vmem:[%s0 + $0x10] sm:$0xf]
    %v95 = vld [vmem:[%s0 + $0x14] sm:$0xf]
    %v96 = vld [vmem:[%s0 + $0x18] sm:$0xf]
    %v97 = vld [vmem:[%s0 + $0x1c] sm:$0xf]
    %v98 = vld [vmem:[%s2] sm:$0xff]
    %v99 = vld [vmem:[%s2 + $0x8] sm:$0xf]
    %v100 = vld [vmem:[%s2 + $0xc] sm:$0xff]
    %v101 = vld [vmem:[%s2 + $0x14] sm:$0xf]
    %v102 = vld [vmem:[%s2 + $0x18] sm:$0xff]
    %v103 = vld [vmem:[%s2 + $0x20] sm:$0xf]
    %v104 = vld [vmem:[%s2 + $0x24] sm:$0xff]
    %v105 = vld [vmem:[%s2 + $0x2c] sm:$0xf]
    %v106 = vld [vmem:[%s4] sm:$0x7]
    %v108 = vperm.slane %v106, 0
    %v109 = vperm.slane %v106, 1
    %v110 = vperm.slane %v106, 2
    %v122 = vunpack.c.l.b16 %v90
    %v123 = vunpack.c.l.b16 %v91
    %v124 = vunpack.c.l.b16 %v92
    %v125 = vunpack.c.l.b16 %v93
    %v126 = vunpack.c.l.b16 %v94
    %v127 = vunpack.c.l.b16 %v95
    %v128 = vunpack.c.l.b16 %v96
    %v129 = vunpack.c.l.b16 %v97
    %v130 = vpack.c.b16 %v123, %v122
    %v131 = vpack.c.b16 %v125, %v124
    %v132 = vpack.c.b16 %v127, %v126
    %v133 = vpack.c.b16 %v129, %v128
    %v142 = vunpack.c.l.b16 %v98
    %v143 = vunpack.c.h.b16 %v98
    %v144 = vunpack.c.l.b16 %v99
    %v145 = vunpack.c.l.b16 %v100
    %v146 = vunpack.c.h.b16 %v100
    %v147 = vunpack.c.l.b16 %v101
    %v148 = vunpack.c.l.b16 %v102
    %v149 = vunpack.c.h.b16 %v102
    %v150 = vunpack.c.l.b16 %v103
    %v151 = vunpack.c.l.b16 %v104
    %v152 = vunpack.c.h.b16 %v104
    %v153 = vunpack.c.l.b16 %v105
    %v154 = vpack.c.b16 %v145, %v142
    %v155 = vpack.c.b16 %v146, %v143
    %v156 = vpack.c.b16 %v147, %v144
    %v157 = vpack.c.b16 %v151, %v148
    %v158 = vpack.c.b16 %v152, %v149
    %v159 = vpack.c.b16 %v153, %v150
    %vm166 = vcmask 261120
    %v168 = vsel %vm166, %v130, 0
    %v171 = vsel %vm166, %v131, 0
    %v174 = vsel %vm166, %v132, 0
    %v177 = vsel %vm166, %v133, 0
    %179 = vmatpush.bf16.msra.mxu0 0
    %180 = vmatpush.bf16.msra.mxu0 0
    %181 = vmatpush.bf16.msra.mxu0 0
    %182 = vmatpush.bf16.msra.mxu0 0
    %183 = vmatpush.bf16.msra.mxu0 0
    %184 = vmatpush.bf16.msra.mxu0 0
    %185 = vmatpush.bf16.msra.mxu0 %v157
    %186 = vmatpush.bf16.msra.mxu0 %v154
    %187 = vmatmul.bf16.gmra.mxu0 %v168
    %v188 = vpop.f32.mrf.mxu0
    %v189 = vadd.f32 %v108, %v188
    %v190 = vpop.f32.mrf.mxu0
    %v191 = vadd.f32 %v108, %v190
    %192 = vmatmul.bf16.gmra.mxu0 %v171
    %v193 = vpop.f32.mrf.mxu0
    %v194 = vadd.f32 %v108, %v193
    %v195 = vpop.f32.mrf.mxu0
    %v196 = vadd.f32 %v108, %v195
    %197 = vmatmul.bf16.gmra.mxu0 %v174
    %v198 = vpop.f32.mrf.mxu0
    %v199 = vadd.f32 %v108, %v198
    %v200 = vpop.f32.mrf.mxu0
    %v201 = vadd.f32 %v108, %v200
    %202 = vmatmul.bf16.gmra.mxu0 %v177
    %v203 = vpop.f32.mrf.mxu0
    %v204 = vadd.f32 %v108, %v203
    %v205 = vpop.f32.mrf.mxu0
    %v206 = vadd.f32 %v108, %v205
    %207 = vdwg.mxu0
    %208 = vmatpush.bf16.msra.mxu0 0
    %209 = vmatpush.bf16.msra.mxu0 0
    %210 = vmatpush.bf16.msra.mxu0 0
    %211 = vmatpush.bf16.msra.mxu0 0
    %212 = vmatpush.bf16.msra.mxu0 0
    %213 = vmatpush.bf16.msra.mxu0 0
    %214 = vmatpush.bf16.msra.mxu0 %v158
    %215 = vmatpush.bf16.msra.mxu0 %v155
    %216 = vmatmul.bf16.gmra.mxu0 %v168
    %v217 = vpop.f32.mrf.mxu0
    %v218 = vadd.f32 %v109, %v217
    %v219 = vpop.f32.mrf.mxu0
    %v220 = vadd.f32 %v109, %v219
    %221 = vmatmul.bf16.gmra.mxu0 %v171
    %v222 = vpop.f32.mrf.mxu0
    %v223 = vadd.f32 %v109, %v222
    %v224 = vpop.f32.mrf.mxu0
    %v225 = vadd.f32 %v109, %v224
    %226 = vmatmul.bf16.gmra.mxu0 %v174
    %v227 = vpop.f32.mrf.mxu0
    %v228 = vadd.f32 %v109, %v227
    %v229 = vpop.f32.mrf.mxu0
    %v230 = vadd.f32 %v109, %v229
    %231 = vmatmul.bf16.gmra.mxu0 %v177
    %v232 = vpop.f32.mrf.mxu0
    %v233 = vadd.f32 %v109, %v232
    %v234 = vpop.f32.mrf.mxu0
    %v235 = vadd.f32 %v109, %v234
    %236 = vdwg.mxu0
    %237 = vmatpush.bf16.msra.mxu0 0
    %238 = vmatpush.bf16.msra.mxu0 0
    %239 = vmatpush.bf16.msra.mxu0 0
    %240 = vmatpush.bf16.msra.mxu0 0
    %241 = vmatpush.bf16.msra.mxu0 0
    %242 = vmatpush.bf16.msra.mxu0 0
    %243 = vmatpush.bf16.msra.mxu0 %v159
    %244 = vmatpush.bf16.msra.mxu0 %v156
    %245 = vmatmul.bf16.gmra.mxu0 %v168
    %v246 = vpop.f32.mrf.mxu0
    %v247 = vadd.f32 %v110, %v246
    %v248 = vpop.f32.mrf.mxu0
    %v249 = vadd.f32 %v110, %v248
    %250 = vmatmul.bf16.gmra.mxu0 %v171
    %v251 = vpop.f32.mrf.mxu0
    %v252 = vadd.f32 %v110, %v251
    %v253 = vpop.f32.mrf.mxu0
    %v254 = vadd.f32 %v110, %v253
    %255 = vmatmul.bf16.gmra.mxu0 %v174
    %v256 = vpop.f32.mrf.mxu0
    %v257 = vadd.f32 %v110, %v256
    %v258 = vpop.f32.mrf.mxu0
    %v259 = vadd.f32 %v110, %v258
    %260 = vmatmul.bf16.gmra.mxu0 %v177
    %v261 = vpop.f32.mrf.mxu0
    %v262 = vadd.f32 %v110, %v261
    %v263 = vpop.f32.mrf.mxu0
    %v264 = vadd.f32 %v110, %v263
    %265 = vdwg.mxu0
    %v266 = vld [vmem:[#allocation5] sm:$0xff]
    %v267 = vld [vmem:[#allocation5 + $0x8] sm:$0xf]
    %v268 = vld [vmem:[#allocation5 + $0xc] sm:$0xff]
    %v269 = vld [vmem:[#allocation5 + $0x14] sm:$0xf]
    %v270 = vld [vmem:[#allocation5 + $0x18] sm:$0xff]
    %v271 = vld [vmem:[#allocation5 + $0x20] sm:$0xf]
    %v272 = vld [vmem:[#allocation5 + $0x24] sm:$0xff]
    %v273 = vld [vmem:[#allocation5 + $0x2c] sm:$0xf]
    %v274 = vld [vmem:[#allocation5 + $0x30] sm:$0xff]
    %v275 = vld [vmem:[#allocation5 + $0x38] sm:$0xf]
    %v276 = vld [vmem:[#allocation5 + $0x3c] sm:$0xff]
    %v277 = vld [vmem:[#allocation5 + $0x44] sm:$0xf]
    %v278 = vld [vmem:[#allocation5 + $0x48] sm:$0xff]
    %v279 = vld [vmem:[#allocation5 + $0x50] sm:$0xf]
    %v280 = vld [vmem:[#allocation5 + $0x54] sm:$0xff]
    %v281 = vld [vmem:[#allocation5 + $0x5c] sm:$0xf]
    %v282 = vld [vmem:[#allocation5 + $0x60] sm:$0xff]
    %v283 = vld [vmem:[#allocation5 + $0x68] sm:$0xf]
    %v284 = vld [vmem:[#allocation5 + $0x6c] sm:$0xff]
    %v285 = vld [vmem:[#allocation5 + $0x74] sm:$0xf]
    %v286 = vld [vmem:[#allocation5 + $0x78] sm:$0xff]
    %v287 = vld [vmem:[#allocation5 + $0x80] sm:$0xf]
    %v288 = vld [vmem:[#allocation5 + $0x84] sm:$0xff]
    %v289 = vld [vmem:[#allocation5 + $0x8c] sm:$0xf]
    %v290 = vld [vmem:[#allocation5 + $0x90] sm:$0xff]
    %v291 = vld [vmem:[#allocation5 + $0x98] sm:$0xf]
    %v292 = vld [vmem:[#allocation5 + $0x9c] sm:$0xff]
    %v293 = vld [vmem:[#allocation5 + $0xa4] sm:$0xf]
    %v294 = vld [vmem:[#allocation5 + $0xa8] sm:$0xff]
    %v295 = vld [vmem:[#allocation5 + $0xb0] sm:$0xf]
    %v296 = vld [vmem:[#allocation5 + $0xb4] sm:$0xff]
    %v297 = vld [vmem:[#allocation5 + $0xbc] sm:$0xf]
    %v298 = vld [vmem:[#allocation7] sm:$0x7]
    %v300 = vperm.slane %v298, 0
    %v301 = vperm.slane %v298, 1
    %v302 = vperm.slane %v298, 2
    %v306 = vld [vmem:[#allocation2] sm:$0xff]
    %v307 = vpack.c.bf16 %v306, %v306
    %v340 = vunpack.c.l.b16 %v266
    %v341 = vunpack.c.h.b16 %v266
    %v342 = vunpack.c.l.b16 %v267
    %v343 = vunpack.c.l.b16 %v268
    %v344 = vunpack.c.h.b16 %v268
    %v345 = vunpack.c.l.b16 %v269
    %v346 = vunpack.c.l.b16 %v270
    %v347 = vunpack.c.h.b16 %v270
    %v348 = vunpack.c.l.b16 %v271
    %v349 = vunpack.c.l.b16 %v272
    %v350 = vunpack.c.h.b16 %v272
    %v351 = vunpack.c.l.b16 %v273
    %v352 = vunpack.c.l.b16 %v274
    %v353 = vunpack.c.h.b16 %v274
    %v354 = vunpack.c.l.b16 %v275
    %v355 = vunpack.c.l.b16 %v276
    %v356 = vunpack.c.h.b16 %v276
    %v357 = vunpack.c.l.b16 %v277
    %v358 = vunpack.c.l.b16 %v278
    %v359 = vunpack.c.h.b16 %v278
    %v360 = vunpack.c.l.b16 %v279
    %v361 = vunpack.c.l.b16 %v280
    %v362 = vunpack.c.h.b16 %v280
    %v363 = vunpack.c.l.b16 %v281
    %v364 = vunpack.c.l.b16 %v282
    %v365 = vunpack.c.h.b16 %v282
    %v366 = vunpack.c.l.b16 %v283
    %v367 = vunpack.c.l.b16 %v284
    %v368 = vunpack.c.h.b16 %v284
    %v369 = vunpack.c.l.b16 %v285
    %v370 = vunpack.c.l.b16 %v286
    %v371 = vunpack.c.h.b16 %v286
    %v372 = vunpack.c.l.b16 %v287
    %v373 = vunpack.c.l.b16 %v288
    %v374 = vunpack.c.h.b16 %v288
    %v375 = vunpack.c.l.b16 %v289
    %v376 = vunpack.c.l.b16 %v290
    %v377 = vunpack.c.h.b16 %v290
    %v378 = vunpack.c.l.b16 %v291
    %v379 = vunpack.c.l.b16 %v292
    %v380 = vunpack.c.h.b16 %v292
    %v381 = vunpack.c.l.b16 %v293
    %v382 = vunpack.c.l.b16 %v294
    %v383 = vunpack.c.h.b16 %v294
    %v384 = vunpack.c.l.b16 %v295
    %v385 = vunpack.c.l.b16 %v296
    %v386 = vunpack.c.h.b16 %v296
    %v387 = vunpack.c.l.b16 %v297
    %v388 = vpack.c.b16 %v343, %v340
    %v389 = vpack.c.b16 %v344, %v341
    %v390 = vpack.c.b16 %v345, %v342
    %v391 = vpack.c.b16 %v349, %v346
    %v392 = vpack.c.b16 %v350, %v347
    %v393 = vpack.c.b16 %v351, %v348
    %v394 = vpack.c.b16 %v355, %v352
    %v395 = vpack.c.b16 %v356, %v353
    %v396 = vpack.c.b16 %v357, %v354
    %v397 = vpack.c.b16 %v361, %v358
    %v398 = vpack.c.b16 %v362, %v359
    %v399 = vpack.c.b16 %v363, %v360
    %v400 = vpack.c.b16 %v367, %v364
    %v401 = vpack.c.b16 %v368, %v365
    %v402 = vpack.c.b16 %v369, %v366
    %v403 = vpack.c.b16 %v373, %v370
    %v404 = vpack.c.b16 %v374, %v371
    %v405 = vpack.c.b16 %v375, %v372
    %v406 = vpack.c.b16 %v379, %v376
    %v407 = vpack.c.b16 %v380, %v377
    %v408 = vpack.c.b16 %v381, %v378
    %v409 = vpack.c.b16 %v385, %v382
    %v410 = vpack.c.b16 %v386, %v383
    %v411 = vpack.c.b16 %v387, %v384
    %436 = vmatpush.bf16.msra.mxu0 %v409
    %437 = vmatpush.bf16.msra.mxu0 %v406
    %438 = vmatpush.bf16.msra.mxu0 %v403
    %439 = vmatpush.bf16.msra.mxu0 %v400
    %440 = vmatpush.bf16.msra.mxu0 %v397
    %441 = vmatpush.bf16.msra.mxu0 %v394
    %442 = vmatpush.bf16.msra.mxu0 %v391
    %443 = vmatpush.bf16.msra.mxu0 %v388
    %444 = vmatmul.bf16.gmra.mxu0 %v307
    %v445 = vpop.f32.mrf.mxu0
    %v446 = vadd.f32 %v300, %v445
    %v447 = vpop.f32.mrf.mxu0
    %448 = vdwg.mxu0
    %449 = vmatpush.bf16.msra.mxu0 %v410
    %450 = vmatpush.bf16.msra.mxu0 %v407
    %451 = vmatpush.bf16.msra.mxu0 %v404
    %452 = vmatpush.bf16.msra.mxu0 %v401
    %453 = vmatpush.bf16.msra.mxu0 %v398
    %454 = vmatpush.bf16.msra.mxu0 %v395
    %455 = vmatpush.bf16.msra.mxu0 %v392
    %456 = vmatpush.bf16.msra.mxu0 %v389
    %457 = vmatmul.bf16.gmra.mxu0 %v307
    %v458 = vpop.f32.mrf.mxu0
    %v459 = vadd.f32 %v301, %v458
    %v460 = vpop.f32.mrf.mxu0
    %461 = vdwg.mxu0
    %462 = vmatpush.bf16.msra.mxu0 %v411
    %463 = vmatpush.bf16.msra.mxu0 %v408
    %464 = vmatpush.bf16.msra.mxu0 %v405
    %465 = vmatpush.bf16.msra.mxu0 %v402
    %466 = vmatpush.bf16.msra.mxu0 %v399
    %467 = vmatpush.bf16.msra.mxu0 %v396
    %468 = vmatpush.bf16.msra.mxu0 %v393
    %469 = vmatpush.bf16.msra.mxu0 %v390
    %470 = vmatmul.bf16.gmra.mxu0 %v307
    %v471 = vpop.f32.mrf.mxu0
    %v472 = vadd.f32 %v302, %v471
    %v473 = vpop.f32.mrf.mxu0
    %474 = vdwg.mxu0
    %v475 = vadd.f32 %v189, %v446
    %v476 = vxor.u32 %v475, 2147483648
    %v477 = vmul.f32 %v476, 1.442695
    %v478 = vpow.pop %v477
    %v479 = vadd.f32 %v478, 1.0
    %v480 = vrcp.pop %v479
    %v481 = vmul.f32 %v479, %v480
    %v482 = vsub.f32 1.0, %v481
    %v483 = vmul.f32 %v480, %v482
    %v484 = vadd.f32 %v480, %v483
    %vm485 = vweird.f32 %v479
    %vm486 = vweird.f32 %v480
    %vm487 = vmor %vm485, %vm486
    %v488 = vsel %vm487, %v480, %v484
    %v489 = vand.u32 2147483647, %v479
    %vm490 = vcmp.eq.f32.partialorder %v489, 8.507059e+37
    %v491 = vand.u32 %v479, 2147483648
    %v492 = vor.u32 1.1754944e-38, %v491
    %v493 = vsel %vm490, %v492, %v488
    %v494 = vmul.f32 1.0, %v493
    %v495 = vadd.f32 %v218, %v459
    %v496 = vxor.u32 %v495, 2147483648
    %v497 = vmul.f32 %v496, 1.442695
    %v498 = vpow.pop %v497
    %v499 = vadd.f32 %v498, 1.0
    %v500 = vrcp.pop %v499
    %v501 = vmul.f32 %v499, %v500
    %v502 = vsub.f32 1.0, %v501
    %v503 = vmul.f32 %v500, %v502
    %v504 = vadd.f32 %v500, %v503
    %vm505 = vweird.f32 %v499
    %vm506 = vweird.f32 %v500
    %vm507 = vmor %vm505, %vm506
    %v508 = vsel %vm507, %v500, %v504
    %v509 = vand.u32 2147483647, %v499
    %vm510 = vcmp.eq.f32.partialorder %v509, 8.507059e+37
    %v511 = vand.u32 %v499, 2147483648
    %v512 = vor.u32 1.1754944e-38, %v511
    %v513 = vsel %vm510, %v512, %v508
    %v514 = vmul.f32 1.0, %v513
    %v515 = vmul.f32 %v494, %v472
    %v516 = vadd.f32 %v247, %v515
    %v517 = vtanh.pop %v516
    %v518 = vsub.f32 1.0, %v514
    %v519 = vmul.f32 %v518, %v517
    %v520 = vmul.f32 %v514, %v306
    %v521 = vadd.f32 %v519, %v520
    %v522 = vpack.c.bf16 %v521, %v521
    %523 = vmatpush.bf16.msra.mxu0 %v409
    %524 = vmatpush.bf16.msra.mxu0 %v406
    %525 = vmatpush.bf16.msra.mxu0 %v403
    %526 = vmatpush.bf16.msra.mxu0 %v400
    %527 = vmatpush.bf16.msra.mxu0 %v397
    %528 = vmatpush.bf16.msra.mxu0 %v394
    %529 = vmatpush.bf16.msra.mxu0 %v391
    %530 = vmatpush.bf16.msra.mxu0 %v388
    %531 = vmatmul.bf16.gmra.mxu0 %v522
    %v532 = vpop.f32.mrf.mxu0
    %v533 = vadd.f32 %v300, %v532
    %v534 = vpop.f32.mrf.mxu0
    %535 = vdwg.mxu0
    %536 = vmatpush.bf16.msra.mxu0 %v410
    %537 = vmatpush.bf16.msra.mxu0 %v407
    %538 = vmatpush.bf16.msra.mxu0 %v404
    %539 = vmatpush.bf16.msra.mxu0 %v401
    %540 = vmatpush.bf16.msra.mxu0 %v398
    %541 = vmatpush.bf16.msra.mxu0 %v395
    %542 = vmatpush.bf16.msra.mxu0 %v392
    %543 = vmatpush.bf16.msra.mxu0 %v389
    %544 = vmatmul.bf16.gmra.mxu0 %v522
    %v545 = vpop.f32.mrf.mxu0
    %v546 = vadd.f32 %v301, %v545
    %v547 = vpop.f32.mrf.mxu0
    %548 = vdwg.mxu0
    %549 = vmatpush.bf16.msra.mxu0 %v411
    %550 = vmatpush.bf16.msra.mxu0 %v408
    %551 = vmatpush.bf16.msra.mxu0 %v405
    %552 = vmatpush.bf16.msra.mxu0 %v402
    %553 = vmatpush.bf16.msra.mxu0 %v399
    %554 = vmatpush.bf16.msra.mxu0 %v396
    %555 = vmatpush.bf16.msra.mxu0 %v393
    %556 = vmatpush.bf16.msra.mxu0 %v390
    %557 = vmatmul.bf16.gmra.mxu0 %v522
    %v558 = vpop.f32.mrf.mxu0
    %v559 = vadd.f32 %v302, %v558
    %v560 = vpop.f32.mrf.mxu0
    %561 = vdwg.mxu0
    %v562 = vadd.f32 %v191, %v533
    %v563 = vxor.u32 %v562, 2147483648
    %v564 = vmul.f32 %v563, 1.442695
    %v565 = vpow.pop %v564
    %v566 = vadd.f32 %v565, 1.0
    %v567 = vrcp.pop %v566
    %v568 = vmul.f32 %v566, %v567
    %v569 = vsub.f32 1.0, %v568
    %v570 = vmul.f32 %v567, %v569
    %v571 = vadd.f32 %v567, %v570
    %vm572 = vweird.f32 %v566
    %vm573 = vweird.f32 %v567
    %vm574 = vmor %vm572, %vm573
    %v575 = vsel %vm574, %v567, %v571
    %v576 = vand.u32 2147483647, %v566
    %vm577 = vcmp.eq.f32.partialorder %v576, 8.507059e+37
    %v578 = vand.u32 %v566, 2147483648
    %v579 = vor.u32 1.1754944e-38, %v578
    %v580 = vsel %vm577, %v579, %v575
    %v581 = vmul.f32 1.0, %v580
    %v582 = vadd.f32 %v220, %v546
    %v583 = vxor.u32 %v582, 2147483648
    %v584 = vmul.f32 %v583, 1.442695
    %v585 = vpow.pop %v584
    %v586 = vadd.f32 %v585, 1.0
    %v587 = vrcp.pop %v586
    %v588 = vmul.f32 %v586, %v587
    %v589 = vsub.f32 1.0, %v588
    %v590 = vmul.f32 %v587, %v589
    %v591 = vadd.f32 %v587, %v590
    %vm592 = vweird.f32 %v586
    %vm593 = vweird.f32 %v587
    %vm594 = vmor %vm592, %vm593
    %v595 = vsel %vm594, %v587, %v591
    %v596 = vand.u32 2147483647, %v586
    %vm597 = vcmp.eq.f32.partialorder %v596, 8.507059e+37
    %v598 = vand.u32 %v586, 2147483648
    %v599 = vor.u32 1.1754944e-38, %v598
    %v600 = vsel %vm597, %v599, %v595
    %v601 = vmul.f32 1.0, %v600
    %v602 = vmul.f32 %v581, %v559
    %v603 = vadd.f32 %v249, %v602
    %v604 = vtanh.pop %v603
    %v605 = vsub.f32 1.0, %v601
    %v606 = vmul.f32 %v605, %v604
    %v607 = vmul.f32 %v601, %v521
    %v608 = vadd.f32 %v606, %v607
    %v609 = vpack.c.bf16 %v608, %v608
    %610 = vmatpush.bf16.msra.mxu0 %v409
    %611 = vmatpush.bf16.msra.mxu0 %v406
    %612 = vmatpush.bf16.msra.mxu0 %v403
    %613 = vmatpush.bf16.msra.mxu0 %v400
    %614 = vmatpush.bf16.msra.mxu0 %v397
    %615 = vmatpush.bf16.msra.mxu0 %v394
    %616 = vmatpush.bf16.msra.mxu0 %v391
    %617 = vmatpush.bf16.msra.mxu0 %v388
    %618 = vmatmul.bf16.gmra.mxu0 %v609
    %v619 = vpop.f32.mrf.mxu0
    %v620 = vadd.f32 %v300, %v619
    %v621 = vpop.f32.mrf.mxu0
    %622 = vdwg.mxu0
    %623 = vmatpush.bf16.msra.mxu0 %v410
    %624 = vmatpush.bf16.msra.mxu0 %v407
    %625 = vmatpush.bf16.msra.mxu0 %v404
    %626 = vmatpush.bf16.msra.mxu0 %v401
    %627 = vmatpush.bf16.msra.mxu0 %v398
    %628 = vmatpush.bf16.msra.mxu0 %v395
    %629 = vmatpush.bf16.msra.mxu0 %v392
    %630 = vmatpush.bf16.msra.mxu0 %v389
    %631 = vmatmul.bf16.gmra.mxu0 %v609
    %v632 = vpop.f32.mrf.mxu0
    %v633 = vadd.f32 %v301, %v632
    %v634 = vpop.f32.mrf.mxu0
    %635 = vdwg.mxu0
    %636 = vmatpush.bf16.msra.mxu0 %v411
    %637 = vmatpush.bf16.msra.mxu0 %v408
    %638 = vmatpush.bf16.msra.mxu0 %v405
    %639 = vmatpush.bf16.msra.mxu0 %v402
    %640 = vmatpush.bf16.msra.mxu0 %v399
    %641 = vmatpush.bf16.msra.mxu0 %v396
    %642 = vmatpush.bf16.msra.mxu0 %v393
    %643 = vmatpush.bf16.msra.mxu0 %v390
    %644 = vmatmul.bf16.gmra.mxu0 %v609
    %v645 = vpop.f32.mrf.mxu0
    %v646 = vadd.f32 %v302, %v645
    %v647 = vpop.f32.mrf.mxu0
    %648 = vdwg.mxu0
    %v649 = vadd.f32 %v194, %v620
    %v650 = vxor.u32 %v649, 2147483648
    %v651 = vmul.f32 %v650, 1.442695
    %v652 = vpow.pop %v651
    %v653 = vadd.f32 %v652, 1.0
    %v654 = vrcp.pop %v653
    %v655 = vmul.f32 %v653, %v654
    %v656 = vsub.f32 1.0, %v655
    %v657 = vmul.f32 %v654, %v656
    %v658 = vadd.f32 %v654, %v657
    %vm659 = vweird.f32 %v653
    %vm660 = vweird.f32 %v654
    %vm661 = vmor %vm659, %vm660
    %v662 = vsel %vm661, %v654, %v658
    %v663 = vand.u32 2147483647, %v653
    %vm664 = vcmp.eq.f32.partialorder %v663, 8.507059e+37
    %v665 = vand.u32 %v653, 2147483648
    %v666 = vor.u32 1.1754944e-38, %v665
    %v667 = vsel %vm664, %v666, %v662
    %v668 = vmul.f32 1.0, %v667
    %v669 = vadd.f32 %v223, %v633
    %v670 = vxor.u32 %v669, 2147483648
    %v671 = vmul.f32 %v670, 1.442695
    %v672 = vpow.pop %v671
    %v673 = vadd.f32 %v672, 1.0
    %v674 = vrcp.pop %v673
    %v675 = vmul.f32 %v673, %v674
    %v676 = vsub.f32 1.0, %v675
    %v677 = vmul.f32 %v674, %v676
    %v678 = vadd.f32 %v674, %v677
    %vm679 = vweird.f32 %v673
    %vm680 = vweird.f32 %v674
    %vm681 = vmor %vm679, %vm680
    %v682 = vsel %vm681, %v674, %v678
    %v683 = vand.u32 2147483647, %v673
    %vm684 = vcmp.eq.f32.partialorder %v683, 8.507059e+37
    %v685 = vand.u32 %v673, 2147483648
    %v686 = vor.u32 1.1754944e-38, %v685
    %v687 = vsel %vm684, %v686, %v682
    %v688 = vmul.f32 1.0, %v687
    %v689 = vmul.f32 %v668, %v646
    %v690 = vadd.f32 %v252, %v689
    %v691 = vtanh.pop %v690
    %v692 = vsub.f32 1.0, %v688
    %v693 = vmul.f32 %v692, %v691
    %v694 = vmul.f32 %v688, %v608
    %v695 = vadd.f32 %v693, %v694
    %v696 = vpack.c.bf16 %v695, %v695
    %697 = vmatpush.bf16.msra.mxu0 %v409
    %698 = vmatpush.bf16.msra.mxu0 %v406
    %699 = vmatpush.bf16.msra.mxu0 %v403
    %700 = vmatpush.bf16.msra.mxu0 %v400
    %701 = vmatpush.bf16.msra.mxu0 %v397
    %702 = vmatpush.bf16.msra.mxu0 %v394
    %703 = vmatpush.bf16.msra.mxu0 %v391
    %704 = vmatpush.bf16.msra.mxu0 %v388
    %705 = vmatmul.bf16.gmra.mxu0 %v696
    %v706 = vpop.f32.mrf.mxu0
    %v707 = vadd.f32 %v300, %v706
    %v708 = vpop.f32.mrf.mxu0
    %709 = vdwg.mxu0
    %710 = vmatpush.bf16.msra.mxu0 %v410
    %711 = vmatpush.bf16.msra.mxu0 %v407
    %712 = vmatpush.bf16.msra.mxu0 %v404
    %713 = vmatpush.bf16.msra.mxu0 %v401
    %714 = vmatpush.bf16.msra.mxu0 %v398
    %715 = vmatpush.bf16.msra.mxu0 %v395
    %716 = vmatpush.bf16.msra.mxu0 %v392
    %717 = vmatpush.bf16.msra.mxu0 %v389
    %718 = vmatmul.bf16.gmra.mxu0 %v696
    %v719 = vpop.f32.mrf.mxu0
    %v720 = vadd.f32 %v301, %v719
    %v721 = vpop.f32.mrf.mxu0
    %722 = vdwg.mxu0
    %723 = vmatpush.bf16.msra.mxu0 %v411
    %724 = vmatpush.bf16.msra.mxu0 %v408
    %725 = vmatpush.bf16.msra.mxu0 %v405
    %726 = vmatpush.bf16.msra.mxu0 %v402
    %727 = vmatpush.bf16.msra.mxu0 %v399
    %728 = vmatpush.bf16.msra.mxu0 %v396
    %729 = vmatpush.bf16.msra.mxu0 %v393
    %730 = vmatpush.bf16.msra.mxu0 %v390
    %731 = vmatmul.bf16.gmra.mxu0 %v696
    %v732 = vpop.f32.mrf.mxu0
    %v733 = vadd.f32 %v302, %v732
    %v734 = vpop.f32.mrf.mxu0
    %735 = vdwg.mxu0
    %v736 = vadd.f32 %v196, %v707
    %v737 = vxor.u32 %v736, 2147483648
    %v738 = vmul.f32 %v737, 1.442695
    %v739 = vpow.pop %v738
    %v740 = vadd.f32 %v739, 1.0
    %v741 = vrcp.pop %v740
    %v742 = vmul.f32 %v740, %v741
    %v743 = vsub.f32 1.0, %v742
    %v744 = vmul.f32 %v741, %v743
    %v745 = vadd.f32 %v741, %v744
    %vm746 = vweird.f32 %v740
    %vm747 = vweird.f32 %v741
    %vm748 = vmor %vm746, %vm747
    %v749 = vsel %vm748, %v741, %v745
    %v750 = vand.u32 2147483647, %v740
    %vm751 = vcmp.eq.f32.partialorder %v750, 8.507059e+37
    %v752 = vand.u32 %v740, 2147483648
    %v753 = vor.u32 1.1754944e-38, %v752
    %v754 = vsel %vm751, %v753, %v749
    %v755 = vmul.f32 1.0, %v754
    %v756 = vadd.f32 %v225, %v720
    %v757 = vxor.u32 %v756, 2147483648
    %v758 = vmul.f32 %v757, 1.442695
    %v759 = vpow.pop %v758
    %v760 = vadd.f32 %v759, 1.0
    %v761 = vrcp.pop %v760
    %v762 = vmul.f32 %v760, %v761
    %v763 = vsub.f32 1.0, %v762
    %v764 = vmul.f32 %v761, %v763
    %v765 = vadd.f32 %v761, %v764
    %vm766 = vweird.f32 %v760
    %vm767 = vweird.f32 %v761
    %vm768 = vmor %vm766, %vm767
    %v769 = vsel %vm768, %v761, %v765
    %v770 = vand.u32 2147483647, %v760
    %vm771 = vcmp.eq.f32.partialorder %v770, 8.507059e+37
    %v772 = vand.u32 %v760, 2147483648
    %v773 = vor.u32 1.1754944e-38, %v772
    %v774 = vsel %vm771, %v773, %v769
    %v775 = vmul.f32 1.0, %v774
    %v776 = vmul.f32 %v755, %v733
    %v777 = vadd.f32 %v254, %v776
    %v778 = vtanh.pop %v777
    %v779 = vsub.f32 1.0, %v775
    %v780 = vmul.f32 %v779, %v778
    %v781 = vmul.f32 %v775, %v695
    %v782 = vadd.f32 %v780, %v781
    %v783 = vpack.c.bf16 %v782, %v782
    %784 = vmatpush.bf16.msra.mxu0 %v409
    %785 = vmatpush.bf16.msra.mxu0 %v406
    %786 = vmatpush.bf16.msra.mxu0 %v403
    %787 = vmatpush.bf16.msra.mxu0 %v400
    %788 = vmatpush.bf16.msra.mxu0 %v397
    %789 = vmatpush.bf16.msra.mxu0 %v394
    %790 = vmatpush.bf16.msra.mxu0 %v391
    %791 = vmatpush.bf16.msra.mxu0 %v388
    %792 = vmatmul.bf16.gmra.mxu0 %v783
    %v793 = vpop.f32.mrf.mxu0
    %v794 = vadd.f32 %v300, %v793
    %v795 = vpop.f32.mrf.mxu0
    %796 = vdwg.mxu0
    %797 = vmatpush.bf16.msra.mxu0 %v410
    %798 = vmatpush.bf16.msra.mxu0 %v407
    %799 = vmatpush.bf16.msra.mxu0 %v404
    %800 = vmatpush.bf16.msra.mxu0 %v401
    %801 = vmatpush.bf16.msra.mxu0 %v398
    %802 = vmatpush.bf16.msra.mxu0 %v395
    %803 = vmatpush.bf16.msra.mxu0 %v392
    %804 = vmatpush.bf16.msra.mxu0 %v389
    %805 = vmatmul.bf16.gmra.mxu0 %v783
    %v806 = vpop.f32.mrf.mxu0
    %v807 = vadd.f32 %v301, %v806
    %v808 = vpop.f32.mrf.mxu0
    %809 = vdwg.mxu0
    %810 = vmatpush.bf16.msra.mxu0 %v411
    %811 = vmatpush.bf16.msra.mxu0 %v408
    %812 = vmatpush.bf16.msra.mxu0 %v405
    %813 = vmatpush.bf16.msra.mxu0 %v402
    %814 = vmatpush.bf16.msra.mxu0 %v399
    %815 = vmatpush.bf16.msra.mxu0 %v396
    %816 = vmatpush.bf16.msra.mxu0 %v393
    %817 = vmatpush.bf16.msra.mxu0 %v390
    %818 = vmatmul.bf16.gmra.mxu0 %v783
    %v819 = vpop.f32.mrf.mxu0
    %v820 = vadd.f32 %v302, %v819
    %v821 = vpop.f32.mrf.mxu0
    %822 = vdwg.mxu0
    %v823 = vadd.f32 %v199, %v794
    %v824 = vxor.u32 %v823, 2147483648
    %v825 = vmul.f32 %v824, 1.442695
    %v826 = vpow.pop %v825
    %v827 = vadd.f32 %v826, 1.0
    %v828 = vrcp.pop %v827
    %v829 = vmul.f32 %v827, %v828
    %v830 = vsub.f32 1.0, %v829
    %v831 = vmul.f32 %v828, %v830
    %v832 = vadd.f32 %v828, %v831
    %vm833 = vweird.f32 %v827
    %vm834 = vweird.f32 %v828
    %vm835 = vmor %vm833, %vm834
    %v836 = vsel %vm835, %v828, %v832
    %v837 = vand.u32 2147483647, %v827
    %vm838 = vcmp.eq.f32.partialorder %v837, 8.507059e+37
    %v839 = vand.u32 %v827, 2147483648
    %v840 = vor.u32 1.1754944e-38, %v839
    %v841 = vsel %vm838, %v840, %v836
    %v842 = vmul.f32 1.0, %v841
    %v843 = vadd.f32 %v228, %v807
    %v844 = vxor.u32 %v843, 2147483648
    %v845 = vmul.f32 %v844, 1.442695
    %v846 = vpow.pop %v845
    %v847 = vadd.f32 %v846, 1.0
    %v848 = vrcp.pop %v847
    %v849 = vmul.f32 %v847, %v848
    %v850 = vsub.f32 1.0, %v849
    %v851 = vmul.f32 %v848, %v850
    %v852 = vadd.f32 %v848, %v851
    %vm853 = vweird.f32 %v847
    %vm854 = vweird.f32 %v848
    %vm855 = vmor %vm853, %vm854
    %v856 = vsel %vm855, %v848, %v852
    %v857 = vand.u32 2147483647, %v847
    %vm858 = vcmp.eq.f32.partialorder %v857, 8.507059e+37
    %v859 = vand.u32 %v847, 2147483648
    %v860 = vor.u32 1.1754944e-38, %v859
    %v861 = vsel %vm858, %v860, %v856
    %v862 = vmul.f32 1.0, %v861
    %v863 = vmul.f32 %v842, %v820
    %v864 = vadd.f32 %v257, %v863
    %v865 = vtanh.pop %v864
    %v866 = vsub.f32 1.0, %v862
    %v867 = vmul.f32 %v866, %v865
    %v868 = vmul.f32 %v862, %v782
    %v869 = vadd.f32 %v867, %v868
    %v870 = vpack.c.bf16 %v869, %v869
    %871 = vmatpush.bf16.msra.mxu0 %v409
    %872 = vmatpush.bf16.msra.mxu0 %v406
    %873 = vmatpush.bf16.msra.mxu0 %v403
    %874 = vmatpush.bf16.msra.mxu0 %v400
    %875 = vmatpush.bf16.msra.mxu0 %v397
    %876 = vmatpush.bf16.msra.mxu0 %v394
    %877 = vmatpush.bf16.msra.mxu0 %v391
    %878 = vmatpush.bf16.msra.mxu0 %v388
    %879 = vmatmul.bf16.gmra.mxu0 %v870
    %v880 = vpop.f32.mrf.mxu0
    %v881 = vadd.f32 %v300, %v880
    %v882 = vpop.f32.mrf.mxu0
    %883 = vdwg.mxu0
    %884 = vmatpush.bf16.msra.mxu0 %v410
    %885 = vmatpush.bf16.msra.mxu0 %v407
    %886 = vmatpush.bf16.msra.mxu0 %v404
    %887 = vmatpush.bf16.msra.mxu0 %v401
    %888 = vmatpush.bf16.msra.mxu0 %v398
    %889 = vmatpush.bf16.msra.mxu0 %v395
    %890 = vmatpush.bf16.msra.mxu0 %v392
    %891 = vmatpush.bf16.msra.mxu0 %v389
    %892 = vmatmul.bf16.gmra.mxu0 %v870
    %v893 = vpop.f32.mrf.mxu0
    %v894 = vadd.f32 %v301, %v893
    %v895 = vpop.f32.mrf.mxu0
    %896 = vdwg.mxu0
    %897 = vmatpush.bf16.msra.mxu0 %v411
    %898 = vmatpush.bf16.msra.mxu0 %v408
    %899 = vmatpush.bf16.msra.mxu0 %v405
    %900 = vmatpush.bf16.msra.mxu0 %v402
    %901 = vmatpush.bf16.msra.mxu0 %v399
    %902 = vmatpush.bf16.msra.mxu0 %v396
    %903 = vmatpush.bf16.msra.mxu0 %v393
    %904 = vmatpush.bf16.msra.mxu0 %v390
    %905 = vmatmul.bf16.gmra.mxu0 %v870
    %v906 = vpop.f32.mrf.mxu0
    %v907 = vadd.f32 %v302, %v906
    %v908 = vpop.f32.mrf.mxu0
    %909 = vdwg.mxu0
    %v910 = vadd.f32 %v201, %v881
    %v911 = vxor.u32 %v910, 2147483648
    %v912 = vmul.f32 %v911, 1.442695
    %v913 = vpow.pop %v912
    %v914 = vadd.f32 %v913, 1.0
    %v915 = vrcp.pop %v914
    %v916 = vmul.f32 %v914, %v915
    %v917 = vsub.f32 1.0, %v916
    %v918 = vmul.f32 %v915, %v917
    %v919 = vadd.f32 %v915, %v918
    %vm920 = vweird.f32 %v914
    %vm921 = vweird.f32 %v915
    %vm922 = vmor %vm920, %vm921
    %v923 = vsel %vm922, %v915, %v919
    %v924 = vand.u32 2147483647, %v914
    %vm925 = vcmp.eq.f32.partialorder %v924, 8.507059e+37
    %v926 = vand.u32 %v914, 2147483648
    %v927 = vor.u32 1.1754944e-38, %v926
    %v928 = vsel %vm925, %v927, %v923
    %v929 = vmul.f32 1.0, %v928
    %v930 = vadd.f32 %v230, %v894
    %v931 = vxor.u32 %v930, 2147483648
    %v932 = vmul.f32 %v931, 1.442695
    %v933 = vpow.pop %v932
    %v934 = vadd.f32 %v933, 1.0
    %v935 = vrcp.pop %v934
    %v936 = vmul.f32 %v934, %v935
    %v937 = vsub.f32 1.0, %v936
    %v938 = vmul.f32 %v935, %v937
    %v939 = vadd.f32 %v935, %v938
    %vm940 = vweird.f32 %v934
    %vm941 = vweird.f32 %v935
    %vm942 = vmor %vm940, %vm941
    %v943 = vsel %vm942, %v935, %v939
    %v944 = vand.u32 2147483647, %v934
    %vm945 = vcmp.eq.f32.partialorder %v944, 8.507059e+37
    %v946 = vand.u32 %v934, 2147483648
    %v947 = vor.u32 1.1754944e-38, %v946
    %v948 = vsel %vm945, %v947, %v943
    %v949 = vmul.f32 1.0, %v948
    %v950 = vmul.f32 %v929, %v907
    %v951 = vadd.f32 %v259, %v950
    %v952 = vtanh.pop %v951
    %v953 = vsub.f32 1.0, %v949
    %v954 = vmul.f32 %v953, %v952
    %v955 = vmul.f32 %v949, %v869
    %v956 = vadd.f32 %v954, %v955
    %v957 = vpack.c.bf16 %v956, %v956
    %958 = vmatpush.bf16.msra.mxu0 %v409
    %959 = vmatpush.bf16.msra.mxu0 %v406
    %960 = vmatpush.bf16.msra.mxu0 %v403
    %961 = vmatpush.bf16.msra.mxu0 %v400
    %962 = vmatpush.bf16.msra.mxu0 %v397
    %963 = vmatpush.bf16.msra.mxu0 %v394
    %964 = vmatpush.bf16.msra.mxu0 %v391
    %965 = vmatpush.bf16.msra.mxu0 %v388
    %966 = vmatmul.bf16.gmra.mxu0 %v957
    %v967 = vpop.f32.mrf.mxu0
    %v968 = vadd.f32 %v300, %v967
    %v969 = vpop.f32.mrf.mxu0
    %970 = vdwg.mxu0
    %971 = vmatpush.bf16.msra.mxu0 %v410
    %972 = vmatpush.bf16.msra.mxu0 %v407
    %973 = vmatpush.bf16.msra.mxu0 %v404
    %974 = vmatpush.bf16.msra.mxu0 %v401
    %975 = vmatpush.bf16.msra.mxu0 %v398
    %976 = vmatpush.bf16.msra.mxu0 %v395
    %977 = vmatpush.bf16.msra.mxu0 %v392
    %978 = vmatpush.bf16.msra.mxu0 %v389
    %979 = vmatmul.bf16.gmra.mxu0 %v957
    %v980 = vpop.f32.mrf.mxu0
    %v981 = vadd.f32 %v301, %v980
    %v982 = vpop.f32.mrf.mxu0
    %983 = vdwg.mxu0
    %984 = vmatpush.bf16.msra.mxu0 %v411
    %985 = vmatpush.bf16.msra.mxu0 %v408
    %986 = vmatpush.bf16.msra.mxu0 %v405
    %987 = vmatpush.bf16.msra.mxu0 %v402
    %988 = vmatpush.bf16.msra.mxu0 %v399
    %989 = vmatpush.bf16.msra.mxu0 %v396
    %990 = vmatpush.bf16.msra.mxu0 %v393
    %991 = vmatpush.bf16.msra.mxu0 %v390
    %992 = vmatmul.bf16.gmra.mxu0 %v957
    %v993 = vpop.f32.mrf.mxu0
    %v994 = vadd.f32 %v302, %v993
    %v995 = vpop.f32.mrf.mxu0
    %996 = vdwg.mxu0
    %v997 = vadd.f32 %v204, %v968
    %v998 = vxor.u32 %v997, 2147483648
    %v999 = vmul.f32 %v998, 1.442695
    %v1000 = vpow.pop %v999
    %v1001 = vadd.f32 %v1000, 1.0
    %v1002 = vrcp.pop %v1001
    %v1003 = vmul.f32 %v1001, %v1002
    %v1004 = vsub.f32 1.0, %v1003
    %v1005 = vmul.f32 %v1002, %v1004
    %v1006 = vadd.f32 %v1002, %v1005
    %vm1007 = vweird.f32 %v1001
    %vm1008 = vweird.f32 %v1002
    %vm1009 = vmor %vm1007, %vm1008
    %v1010 = vsel %vm1009, %v1002, %v1006
    %v1011 = vand.u32 2147483647, %v1001
    %vm1012 = vcmp.eq.f32.partialorder %v1011, 8.507059e+37
    %v1013 = vand.u32 %v1001, 2147483648
    %v1014 = vor.u32 1.1754944e-38, %v1013
    %v1015 = vsel %vm1012, %v1014, %v1010
    %v1016 = vmul.f32 1.0, %v1015
    %v1017 = vadd.f32 %v233, %v981
    %v1018 = vxor.u32 %v1017, 2147483648
    %v1019 = vmul.f32 %v1018, 1.442695
    %v1020 = vpow.pop %v1019
    %v1021 = vadd.f32 %v1020, 1.0
    %v1022 = vrcp.pop %v1021
    %v1023 = vmul.f32 %v1021, %v1022
    %v1024 = vsub.f32 1.0, %v1023
    %v1025 = vmul.f32 %v1022, %v1024
    %v1026 = vadd.f32 %v1022, %v1025
    %vm1027 = vweird.f32 %v1021
    %vm1028 = vweird.f32 %v1022
    %vm1029 = vmor %vm1027, %vm1028
    %v1030 = vsel %vm1029, %v1022, %v1026
    %v1031 = vand.u32 2147483647, %v1021
    %vm1032 = vcmp.eq.f32.partialorder %v1031, 8.507059e+37
    %v1033 = vand.u32 %v1021, 2147483648
    %v1034 = vor.u32 1.1754944e-38, %v1033
    %v1035 = vsel %vm1032, %v1034, %v1030
    %v1036 = vmul.f32 1.0, %v1035
    %v1037 = vmul.f32 %v1016, %v994
    %v1038 = vadd.f32 %v262, %v1037
    %v1039 = vtanh.pop %v1038
    %v1040 = vsub.f32 1.0, %v1036
    %v1041 = vmul.f32 %v1040, %v1039
    %v1042 = vmul.f32 %v1036, %v956
    %v1043 = vadd.f32 %v1041, %v1042
    %v1044 = vpack.c.bf16 %v1043, %v1043
    %1045 = vmatpush.bf16.msra.mxu0 %v409
    %1046 = vmatpush.bf16.msra.mxu0 %v406
    %1047 = vmatpush.bf16.msra.mxu0 %v403
    %1048 = vmatpush.bf16.msra.mxu0 %v400
    %1049 = vmatpush.bf16.msra.mxu0 %v397
    %1050 = vmatpush.bf16.msra.mxu0 %v394
    %1051 = vmatpush.bf16.msra.mxu0 %v391
    %1052 = vmatpush.bf16.msra.mxu0 %v388
    %1053 = vmatmul.bf16.gmra.mxu0 %v1044
    %v1054 = vpop.f32.mrf.mxu0
    %v1055 = vadd.f32 %v300, %v1054
    %v1056 = vpop.f32.mrf.mxu0
    %1057 = vdwg.mxu0
    %1058 = vmatpush.bf16.msra.mxu0 %v410
    %1059 = vmatpush.bf16.msra.mxu0 %v407
    %1060 = vmatpush.bf16.msra.mxu0 %v404
    %1061 = vmatpush.bf16.msra.mxu0 %v401
    %1062 = vmatpush.bf16.msra.mxu0 %v398
    %1063 = vmatpush.bf16.msra.mxu0 %v395
    %1064 = vmatpush.bf16.msra.mxu0 %v392
    %1065 = vmatpush.bf16.msra.mxu0 %v389
    %1066 = vmatmul.bf16.gmra.mxu0 %v1044
    %v1067 = vpop.f32.mrf.mxu0
    %v1068 = vadd.f32 %v301, %v1067
    %v1069 = vpop.f32.mrf.mxu0
    %1070 = vdwg.mxu0
    %1071 = vmatpush.bf16.msra.mxu0 %v411
    %1072 = vmatpush.bf16.msra.mxu0 %v408
    %1073 = vmatpush.bf16.msra.mxu0 %v405
    %1074 = vmatpush.bf16.msra.mxu0 %v402
    %1075 = vmatpush.bf16.msra.mxu0 %v399
    %1076 = vmatpush.bf16.msra.mxu0 %v396
    %1077 = vmatpush.bf16.msra.mxu0 %v393
    %1078 = vmatpush.bf16.msra.mxu0 %v390
    %1079 = vmatmul.bf16.gmra.mxu0 %v1044
    %v1080 = vpop.f32.mrf.mxu0
    %v1081 = vadd.f32 %v302, %v1080
    %v1082 = vpop.f32.mrf.mxu0
    %1083 = vdwg.mxu0
    %v1084 = vadd.f32 %v206, %v1055
    %v1085 = vxor.u32 %v1084, 2147483648
    %v1086 = vmul.f32 %v1085, 1.442695
    %v1087 = vpow.pop %v1086
    %v1088 = vadd.f32 %v1087, 1.0
    %v1089 = vrcp.pop %v1088
    %v1090 = vmul.f32 %v1088, %v1089
    %v1091 = vsub.f32 1.0, %v1090
    %v1092 = vmul.f32 %v1089, %v1091
    %v1093 = vadd.f32 %v1089, %v1092
    %vm1094 = vweird.f32 %v1088
    %vm1095 = vweird.f32 %v1089
    %vm1096 = vmor %vm1094, %vm1095
    %v1097 = vsel %vm1096, %v1089, %v1093
    %v1098 = vand.u32 2147483647, %v1088
    %vm1099 = vcmp.eq.f32.partialorder %v1098, 8.507059e+37
    %v1100 = vand.u32 %v1088, 2147483648
    %v1101 = vor.u32 1.1754944e-38, %v1100
    %v1102 = vsel %vm1099, %v1101, %v1097
    %v1103 = vmul.f32 1.0, %v1102
    %v1104 = vadd.f32 %v235, %v1068
    %v1105 = vxor.u32 %v1104, 2147483648
    %v1106 = vmul.f32 %v1105, 1.442695
    %v1107 = vpow.pop %v1106
    %v1108 = vadd.f32 %v1107, 1.0
    %v1109 = vrcp.pop %v1108
    %v1110 = vmul.f32 %v1108, %v1109
    %v1111 = vsub.f32 1.0, %v1110
    %v1112 = vmul.f32 %v1109, %v1111
    %v1113 = vadd.f32 %v1109, %v1112
    %vm1114 = vweird.f32 %v1108
    %vm1115 = vweird.f32 %v1109
    %vm1116 = vmor %vm1114, %vm1115
    %v1117 = vsel %vm1116, %v1109, %v1113
    %v1118 = vand.u32 2147483647, %v1108
    %vm1119 = vcmp.eq.f32.partialorder %v1118, 8.507059e+37
    %v1120 = vand.u32 %v1108, 2147483648
    %v1121 = vor.u32 1.1754944e-38, %v1120
    %v1122 = vsel %vm1119, %v1121, %v1117
    %v1123 = vmul.f32 1.0, %v1122
    %v1124 = vmul.f32 %v1103, %v1081
    %v1125 = vadd.f32 %v264, %v1124
    %v1126 = vtanh.pop %v1125
    %v1127 = vsub.f32 1.0, %v1123
    %v1128 = vmul.f32 %v1127, %v1126
    %v1129 = vmul.f32 %v1123, %v1043
    %v1130 = vadd.f32 %v1128, %v1129
    %v1131 = vld [vmem:[#allocation8] sm:$0xff]
    %v1132 = vld [vmem:[#allocation8 + $0x8] sm:$0xff]
    %v1133 = vld [vmem:[#allocation8 + $0x10] sm:$0xff]
    %v1134 = vld [vmem:[#allocation8 + $0x18] sm:$0xff]
    %v1135 = vld [vmem:[#allocation8 + $0x20] sm:$0xff]
    %v1136 = vld [vmem:[#allocation8 + $0x28] sm:$0xff]
    %v1137 = vld [vmem:[#allocation8 + $0x30] sm:$0xff]
    %v1138 = vld [vmem:[#allocation8 + $0x38] sm:$0xff]
    %v1139 = vld [vmem:[#allocation8 + $0x40] sm:$0xff]
    %v1140 = vld [vmem:[#allocation8 + $0x48] sm:$0xff]
    %v1141 = vld [vmem:[#allocation8 + $0x50] sm:$0xff]
    %v1142 = vld [vmem:[#allocation8 + $0x58] sm:$0xff]
    %v1143 = vld [vmem:[#allocation8 + $0x60] sm:$0xff]
    %v1144 = vld [vmem:[#allocation8 + $0x68] sm:$0xff]
    %v1145 = vld [vmem:[#allocation8 + $0x70] sm:$0xff]
    %v1146 = vld [vmem:[#allocation8 + $0x78] sm:$0xff]
    %v1147 = vld [vmem:[%s7] sm:$0x1]
    %v1149 = vperm.slane %v1147, 0
    %1151 = vmatpush.msra.mxu0 %v1146
    %1152 = vmatpush.msra.mxu0 %v1145
    %1153 = vmatpush.msra.mxu0 %v1144
    %1154 = vmatpush.msra.mxu0 %v1143
    %1155 = vmatpush.msra.mxu0 %v1142
    %1156 = vmatpush.msra.mxu0 %v1141
    %1157 = vmatpush.msra.mxu0 %v1140
    %1158 = vmatpush.msra.mxu0 %v1139
    %1159 = vmatpush.msra.mxu0 %v1138
    %1160 = vmatpush.msra.mxu0 %v1137
    %1161 = vmatpush.msra.mxu0 %v1136
    %1162 = vmatpush.msra.mxu0 %v1135
    %1163 = vmatpush.msra.mxu0 %v1134
    %1164 = vmatpush.msra.mxu0 %v1133
    %1165 = vmatpush.msra.mxu0 %v1132
    %1166 = vmatpush.msra.mxu0 %v1131
    %1167 = vmatmul.f32.gmra.mxu0 %v1130
    %v1168 = vpop.f32.mrf.mxu0
    %v1169 = vadd.f32 %v1149, %v1168
    %1170 = vdwg.mxu0
    %1171 = vst [vmem:[#allocation10] sm:$0xff] %v1169
    // Predicated region
    $region50: #{tpu_custom_call.1} parent=1 // pred_check
      _
    $region51: #{tpu_custom_call.1} parent=1 // pred_check_branch
      %1173 = sbr.rel (0) target = $region53
    $region52: #{tpu_custom_call.1} parent=1 // pred_region
      %1175 = vsyncadd [#allocation4], 0
      %s1177 = sshll.u32 [#allocation10], 4
      %s1178 = int_to_ptr.vmem [resolvable:$true] %s1177
      %s1179 = sshll.u32 %s8, 4
      %s1180 = int_to_ptr.hbm [resolvable:$true] %s1179
      %1182 = dma.vmem_to_hbm [thread:$0]  %s1178, 128, %s1180, [#allocation4]
    $region53: #{tpu_custom_call.1} parent=1 // pred_fallthru
      _
    // Predicated region
    $region54: #{tpu_custom_call.1} parent=1 // pred_check
      _
    $region55: #{tpu_custom_call.1} parent=1 // pred_check_branch
      %1184 = sbr.rel (0) target = $region57
    $region56: #{tpu_custom_call.1} parent=1 // pred_region
      %1186 = dma.done [#allocation4], 128
    $region57: #{tpu_custom_call.1} parent=1 // pred_fallthru
      _
    %1187 = vsyncpa [#allocation3], 1
    %1188 = vsyncpa [#allocation6], 1
    %1189 = vsyncpa [#allocation9], 1
    %1190 = vsyncpa [#allocation4], 1

</llo_original>
